<compile_context>
chip_gen: v5e
topology: v5e:2x2
jax: 0.10.0
libtpu: 0.0.40
codegen_flags: <defaults>
</compile_context>

<pallas_src>
import functools

import jax
import jax.numpy as jnp
from jax import lax
from jax.experimental import pallas as pl
from jax.experimental.pallas import tpu as pltpu


# ----------------------------------------------------------------------------
# Pallas kernel: out = relu( conv_{KHxKW, stride 1}(x_padded) + folded_bias )
# ----------------------------------------------------------------------------
def _conv_bn_relu_kernel(x_ref, w_ref, b_ref, out_ref, *, kh, kw):
    """One (batch element, Cout block) tile.

    x_ref  : (1, Hp, Wp, Cin)      spatially pre-padded input, f32
    w_ref  : (kh*kw, Cin, TCO)     BN-folded weights, bf16, tap-major (k = ky*kw+kx)
    b_ref  : (1, TCO)              BN-folded bias, f32
    out_ref: (1, Ho, Wo, TCO)
    """
    _, Hp, Wp, Cin = x_ref.shape
    _, Ho, Wo, TCO = out_ref.shape

    # bf16 MXU operands, f32 accumulation.  Element-wise math stays f32.
    xp = x_ref[0].astype(jnp.bfloat16)                       # (Hp, Wp, Cin)

    # Build the kw W-shifted slabs ONCE (the only sublane-unaligned slices);
    # the tap loop below indexes only the leading (H) dimension.
    xs = [xp[:, dx:dx + Wo, :] for dx in range(kw)]           # each (Hp, Wo, Cin)

    # Accumulator initialised straight from the bias (no zeros + add pass).
    acc = jnp.broadcast_to(b_ref[...].astype(jnp.float32), (Ho * Wo, TCO))
    for ky in range(kh):
        for kx in range(kw):
            lhs = xs[kx][ky:ky + Ho].reshape(Ho * Wo, Cin)    # leading-dim slice only
            acc = acc + jnp.dot(lhs, w_ref[ky * kw + kx],
                                preferred_element_type=jnp.float32)

    out_ref[0] = jnp.maximum(acc, 0.0).reshape(Ho, Wo, TCO).astype(out_ref.dtype)


# ----------------------------------------------------------------------------
# Host-side glue
# ----------------------------------------------------------------------------
def _round_up(n, m):
    return (n + m - 1) // m * m


def fold_conv_bn(w, b, gamma, beta, mean, var, eps):
    """Fold eval-mode BatchNorm2d into the Conv2d weights/bias.

    w: (Cout, Cin, KH, KW) OIHW, b/gamma/beta/mean/var: (Cout,)
    Returns wk: (KH*KW, Cin, Cout) tap-major, bias: (Cout,)
    """
    scale = gamma / jnp.sqrt(var + eps)                       # (Cout,)
    w_f = w * scale[:, None, None, None]
    b_f = (b - mean) * scale + beta
    cout, cin, kh, kw = w.shape
    wk = jnp.transpose(w_f, (2, 3, 1, 0)).reshape(kh * kw, cin, cout)
    return wk, b_f


def conv_bn_relu_nhwc(x_nhwc, wk, bias, *, kh, kw, padding):
    """x_nhwc: (N, H, W, Cin) f32.  Returns (N, Ho, Wo, Cout) f32."""
    N, H, W, Cin = x_nhwc.shape
    Cout = wk.shape[-1]
    Ho = H + 2 * padding - kh + 1
    Wo = W + 2 * padding - kw + 1

    # Lane-dense output channels for real shapes (728 -> 768); keep small
    # channel counts exact so the toy test doesn't inflate HBM traffic.
    Cp = _round_up(Cout, 128) if Cout >= 128 else Cout
    if Cp != Cout:
        wk = jnp.pad(wk, ((0, 0), (0, 0), (0, Cp - Cout)))
        bias = jnp.pad(bias, ((0, Cp - Cout),))
    TCO = Cp if Cp <= 128 else 128
    n_cb = Cp // TCO

    wk = wk.astype(jnp.bfloat16)                 # MXU operand; halves weight DMA
    bias = bias.reshape(1, Cp).astype(jnp.float32)

    # Spatial zero padding done once on the (cheap) input; avoids any in-kernel
    # pad scratch / per-step re-zeroing / 9 unaligned halo reads.
    xp = jnp.pad(x_nhwc, ((0, 0), (padding, padding), (padding, padding), (0, 0)))
    Hp, Wp = H + 2 * padding, W + 2 * padding

    kernel = functools.partial(_conv_bn_relu_kernel, kh=kh, kw=kw)

    out = pl.pallas_call(
        kernel,
        out_shape=jax.ShapeDtypeStruct((N, Ho, Wo, Cp), x_nhwc.dtype),
        grid_spec=pltpu.PrefetchScalarGridSpec(
            num_scalar_prefetch=0,
            grid=(N, n_cb),  # batch x Cout-block; both parallel (v7x 2-TC friendly)
            in_specs=[
                pl.BlockSpec((1, Hp, Wp, Cin), lambda n, c: (n, 0, 0, 0)),
                pl.BlockSpec((kh * kw, Cin, TCO), lambda n, c: (0, 0, c)),
                pl.BlockSpec((1, TCO), lambda n, c: (0, c)),
            ],
            out_specs=pl.BlockSpec((1, Ho, Wo, TCO), lambda n, c: (n, 0, 0, c)),
        ),
        compiler_params=pltpu.CompilerParams(
            dimension_semantics=("parallel", "parallel")),
    )(xp, wk, bias)

    return out[..., :Cout] if Cp != Cout else out


def conv_block_forward(x_nchw, w, b, gamma, beta, mean, var, eps=1e-5, padding=1):
    """PyTorch conv_block forward: relu(batchnorm(conv(x))).  x: (N, C, H, W)."""
    kh, kw = int(w.shape[2]), int(w.shape[3])
    wk, bf = fold_conv_bn(w, b, gamma, beta, mean, var, eps)
    x_nhwc = jnp.transpose(x_nchw, (0, 2, 3, 1))   # NCHW -> NHWC (kernel layout)
    y = conv_bn_relu_nhwc(x_nhwc, wk, bf, kh=kh, kw=kw, padding=padding)
    return jnp.transpose(y, (0, 3, 1, 2))          # NHWC -> NCHW
    # (An NHWC-native model would skip both boundary transposes entirely.)


# ----------------------------------------------------------------------------
# Pure-JAX reference (NCHW, f32 everywhere) for validation.
# ----------------------------------------------------------------------------
def ref_conv_block(x, w, b, gamma, beta, mean, var, eps=1e-5, padding=1):
    y = lax.conv_general_dilated(
        x, w, (1, 1), [(padding, padding), (padding, padding)],
        dimension_numbers=("NCHW", "OIHW", "NCHW"),
    ) + b[None, :, None, None]
    y = (y - mean[None, :, None, None]) / jnp.sqrt(var[None, :, None, None] + eps)
    y = y * gamma[None, :, None, None] + beta[None, :, None, None]
    return jnp.maximum(y, 0.0)


# ----------------------------------------------------------------------------
if __name__ == "__main__":
    N, Cin, Cout, H, W = 2, 4, 32, 16, 16
    KH = KW = 3
    pad = 1
    eps = 1e-5

    key = jax.random.PRNGKey(0)
    ks = jax.random.split(key, 7)
    x = jax.random.normal(ks[0], (N, Cin, H, W), jnp.float32)
    w = 0.2 * jax.random.normal(ks[1], (Cout, Cin, KH, KW), jnp.float32)
    b = 0.1 * jax.random.normal(ks[2], (Cout,), jnp.float32)
    gamma = 1.0 + 0.1 * jax.random.normal(ks[3], (Cout,), jnp.float32)
    beta = 0.1 * jax.random.normal(ks[4], (Cout,), jnp.float32)
    mean = 0.1 * jax.random.normal(ks[5], (Cout,), jnp.float32)
    var = jax.random.uniform(ks[6], (Cout,), jnp.float32, minval=0.5, maxval=1.5)

    out = conv_block_forward(x, w, b, gamma, beta, mean, var, eps=eps, padding=pad)
    out = jax.block_until_ready(out)

    ref = jax.block_until_ready(
        ref_conv_block(x, w, b, gamma, beta, mean, var, eps=eps, padding=pad))

    assert out.shape == ref.shape == (N, Cout, H, W), out.shape
    max_err = float(jnp.max(jnp.abs(out - ref)))
    # bf16 MXU operands with f32 accumulation vs a pure-f32 reference.
    assert jnp.allclose(out, ref, atol=5e-2, rtol=5e-2), (
        "mismatch vs reference: max abs err = %e" % max_err)
    print("KERNEL_OK")
</pallas_src>

<mosaic_0001>
module attributes {stable_mosaic.version = 11 : i64} {
  func.func @_conv_bn_relu_kernel(%arg0: i32, %arg1: i32, %arg2: memref<1x18x18x4xf32, #tpu.memory_space<vmem>>, %arg3: memref<9x4x32xbf16, #tpu.memory_space<vmem>>, %arg4: memref<1x32xf32, #tpu.memory_space<vmem>>, %arg5: memref<1x16x16x32xf32, #tpu.memory_space<vmem>>) attributes {dimension_semantics = [#tpu.dimension_semantics<parallel>, #tpu.dimension_semantics<parallel>], iteration_bounds = array<i64: 2, 1>, scalar_prefetch = 0 : i64, scratch_operands = 0 : i64, tpu.core_type = #tpu.core_type<tc>, window_params = [{transform_indices = @transform_0, window_bounds = array<i64: 1, 18, 18, 4>}, {transform_indices = @transform_1, window_bounds = array<i64: 9, 4, 32>}, {transform_indices = @transform_2, window_bounds = array<i64: 1, 32>}, {transform_indices = @transform_3, window_bounds = array<i64: 1, 16, 16, 32>}]} {
    %c0 = arith.constant 0 : index
    %c0_0 = arith.constant 0 : index
    %c0_1 = arith.constant 0 : index
    %c0_2 = arith.constant 0 : index
    %0 = vector.load %arg2[%c0, %c0_0, %c0_1, %c0_2] : memref<1x18x18x4xf32, #tpu.memory_space<vmem>>, vector<1x18x18x4xf32>
    %1 = vector.shape_cast %0 : vector<1x18x18x4xf32> to vector<18x18x4xf32>
    %2 = arith.truncf %1 : vector<18x18x4xf32> to vector<18x18x4xbf16>
    %3 = vector.extract_strided_slice %2 {offsets = [0, 0, 0], sizes = [18, 16, 4], strides = [1, 1, 1]} : vector<18x18x4xbf16> to vector<18x16x4xbf16>
    %4 = vector.extract_strided_slice %2 {offsets = [0, 1, 0], sizes = [18, 16, 4], strides = [1, 1, 1]} : vector<18x18x4xbf16> to vector<18x16x4xbf16>
    %5 = vector.extract_strided_slice %2 {offsets = [0, 2, 0], sizes = [18, 16, 4], strides = [1, 1, 1]} : vector<18x18x4xbf16> to vector<18x16x4xbf16>
    %c0_3 = arith.constant 0 : index
    %c0_4 = arith.constant 0 : index
    %6 = vector.load %arg4[%c0_3, %c0_4] : memref<1x32xf32, #tpu.memory_space<vmem>>, vector<1x32xf32>
    %7 = vector.shape_cast %6 : vector<1x32xf32> to vector<1x32xf32>
    %8 = vector.broadcast %7 : vector<1x32xf32> to vector<256x32xf32>
    %9 = vector.extract_strided_slice %3 {offsets = [0, 0, 0], sizes = [16, 16, 4], strides = [1, 1, 1]} : vector<18x16x4xbf16> to vector<16x16x4xbf16>
    %10 = vector.shape_cast %9 : vector<16x16x4xbf16> to vector<256x4xbf16>
    %c0_5 = arith.constant 0 : index
    %c0_6 = arith.constant 0 : index
    %c0_7 = arith.constant 0 : index
    %11 = vector.load %arg3[%c0_5, %c0_6, %c0_7] : memref<9x4x32xbf16, #tpu.memory_space<vmem>>, vector<1x4x32xbf16>
    %12 = vector.shape_cast %11 : vector<1x4x32xbf16> to vector<4x32xbf16>
    %cst = arith.constant dense<0.000000e+00> : vector<256x32xf32>
    %13 = tpu.matmul %10, %12, %cst {dimension_numbers = #tpu.dot_dimension_numbers<[1], [0], [0], [1], [0, 0, 1, 1], [], []>} : vector<256x4xbf16>, vector<4x32xbf16>, vector<256x32xf32> -> vector<256x32xf32>
    %14 = arith.addf %8, %13 : vector<256x32xf32>
    %15 = vector.extract_strided_slice %4 {offsets = [0, 0, 0], sizes = [16, 16, 4], strides = [1, 1, 1]} : vector<18x16x4xbf16> to vector<16x16x4xbf16>
    %16 = vector.shape_cast %15 : vector<16x16x4xbf16> to vector<256x4xbf16>
    %c1 = arith.constant 1 : index
    %c0_8 = arith.constant 0 : index
    %c0_9 = arith.constant 0 : index
    %17 = vector.load %arg3[%c1, %c0_8, %c0_9] : memref<9x4x32xbf16, #tpu.memory_space<vmem>>, vector<1x4x32xbf16>
    %18 = vector.shape_cast %17 : vector<1x4x32xbf16> to vector<4x32xbf16>
    %cst_10 = arith.constant dense<0.000000e+00> : vector<256x32xf32>
    %19 = tpu.matmul %16, %18, %cst_10 {dimension_numbers = #tpu.dot_dimension_numbers<[1], [0], [0], [1], [0, 0, 1, 1], [], []>} : vector<256x4xbf16>, vector<4x32xbf16>, vector<256x32xf32> -> vector<256x32xf32>
    %20 = arith.addf %14, %19 : vector<256x32xf32>
    %21 = vector.extract_strided_slice %5 {offsets = [0, 0, 0], sizes = [16, 16, 4], strides = [1, 1, 1]} : vector<18x16x4xbf16> to vector<16x16x4xbf16>
    %22 = vector.shape_cast %21 : vector<16x16x4xbf16> to vector<256x4xbf16>
    %c2 = arith.constant 2 : index
    %c0_11 = arith.constant 0 : index
    %c0_12 = arith.constant 0 : index
    %23 = vector.load %arg3[%c2, %c0_11, %c0_12] : memref<9x4x32xbf16, #tpu.memory_space<vmem>>, vector<1x4x32xbf16>
    %24 = vector.shape_cast %23 : vector<1x4x32xbf16> to vector<4x32xbf16>
    %cst_13 = arith.constant dense<0.000000e+00> : vector<256x32xf32>
    %25 = tpu.matmul %22, %24, %cst_13 {dimension_numbers = #tpu.dot_dimension_numbers<[1], [0], [0], [1], [0, 0, 1, 1], [], []>} : vector<256x4xbf16>, vector<4x32xbf16>, vector<256x32xf32> -> vector<256x32xf32>
    %26 = arith.addf %20, %25 : vector<256x32xf32>
    %27 = vector.extract_strided_slice %3 {offsets = [1, 0, 0], sizes = [16, 16, 4], strides = [1, 1, 1]} : vector<18x16x4xbf16> to vector<16x16x4xbf16>
    %28 = vector.shape_cast %27 : vector<16x16x4xbf16> to vector<256x4xbf16>
    %c3 = arith.constant 3 : index
    %c0_14 = arith.constant 0 : index
    %c0_15 = arith.constant 0 : index
    %29 = vector.load %arg3[%c3, %c0_14, %c0_15] : memref<9x4x32xbf16, #tpu.memory_space<vmem>>, vector<1x4x32xbf16>
    %30 = vector.shape_cast %29 : vector<1x4x32xbf16> to vector<4x32xbf16>
    %cst_16 = arith.constant dense<0.000000e+00> : vector<256x32xf32>
    %31 = tpu.matmul %28, %30, %cst_16 {dimension_numbers = #tpu.dot_dimension_numbers<[1], [0], [0], [1], [0, 0, 1, 1], [], []>} : vector<256x4xbf16>, vector<4x32xbf16>, vector<256x32xf32> -> vector<256x32xf32>
    %32 = arith.addf %26, %31 : vector<256x32xf32>
    %33 = vector.extract_strided_slice %4 {offsets = [1, 0, 0], sizes = [16, 16, 4], strides = [1, 1, 1]} : vector<18x16x4xbf16> to vector<16x16x4xbf16>
    %34 = vector.shape_cast %33 : vector<16x16x4xbf16> to vector<256x4xbf16>
    %c4 = arith.constant 4 : index
    %c0_17 = arith.constant 0 : index
    %c0_18 = arith.constant 0 : index
    %35 = vector.load %arg3[%c4, %c0_17, %c0_18] : memref<9x4x32xbf16, #tpu.memory_space<vmem>>, vector<1x4x32xbf16>
    %36 = vector.shape_cast %35 : vector<1x4x32xbf16> to vector<4x32xbf16>
    %cst_19 = arith.constant dense<0.000000e+00> : vector<256x32xf32>
    %37 = tpu.matmul %34, %36, %cst_19 {dimension_numbers = #tpu.dot_dimension_numbers<[1], [0], [0], [1], [0, 0, 1, 1], [], []>} : vector<256x4xbf16>, vector<4x32xbf16>, vector<256x32xf32> -> vector<256x32xf32>
    %38 = arith.addf %32, %37 : vector<256x32xf32>
    %39 = vector.extract_strided_slice %5 {offsets = [1, 0, 0], sizes = [16, 16, 4], strides = [1, 1, 1]} : vector<18x16x4xbf16> to vector<16x16x4xbf16>
    %40 = vector.shape_cast %39 : vector<16x16x4xbf16> to vector<256x4xbf16>
    %c5 = arith.constant 5 : index
    %c0_20 = arith.constant 0 : index
    %c0_21 = arith.constant 0 : index
    %41 = vector.load %arg3[%c5, %c0_20, %c0_21] : memref<9x4x32xbf16, #tpu.memory_space<vmem>>, vector<1x4x32xbf16>
    %42 = vector.shape_cast %41 : vector<1x4x32xbf16> to vector<4x32xbf16>
    %cst_22 = arith.constant dense<0.000000e+00> : vector<256x32xf32>
    %43 = tpu.matmul %40, %42, %cst_22 {dimension_numbers = #tpu.dot_dimension_numbers<[1], [0], [0], [1], [0, 0, 1, 1], [], []>} : vector<256x4xbf16>, vector<4x32xbf16>, vector<256x32xf32> -> vector<256x32xf32>
    %44 = arith.addf %38, %43 : vector<256x32xf32>
    %45 = vector.extract_strided_slice %3 {offsets = [2, 0, 0], sizes = [16, 16, 4], strides = [1, 1, 1]} : vector<18x16x4xbf16> to vector<16x16x4xbf16>
    %46 = vector.shape_cast %45 : vector<16x16x4xbf16> to vector<256x4xbf16>
    %c6 = arith.constant 6 : index
    %c0_23 = arith.constant 0 : index
    %c0_24 = arith.constant 0 : index
    %47 = vector.load %arg3[%c6, %c0_23, %c0_24] : memref<9x4x32xbf16, #tpu.memory_space<vmem>>, vector<1x4x32xbf16>
    %48 = vector.shape_cast %47 : vector<1x4x32xbf16> to vector<4x32xbf16>
    %cst_25 = arith.constant dense<0.000000e+00> : vector<256x32xf32>
    %49 = tpu.matmul %46, %48, %cst_25 {dimension_numbers = #tpu.dot_dimension_numbers<[1], [0], [0], [1], [0, 0, 1, 1], [], []>} : vector<256x4xbf16>, vector<4x32xbf16>, vector<256x32xf32> -> vector<256x32xf32>
    %50 = arith.addf %44, %49 : vector<256x32xf32>
    %51 = vector.extract_strided_slice %4 {offsets = [2, 0, 0], sizes = [16, 16, 4], strides = [1, 1, 1]} : vector<18x16x4xbf16> to vector<16x16x4xbf16>
    %52 = vector.shape_cast %51 : vector<16x16x4xbf16> to vector<256x4xbf16>
    %c7 = arith.constant 7 : index
    %c0_26 = arith.constant 0 : index
    %c0_27 = arith.constant 0 : index
    %53 = vector.load %arg3[%c7, %c0_26, %c0_27] : memref<9x4x32xbf16, #tpu.memory_space<vmem>>, vector<1x4x32xbf16>
    %54 = vector.shape_cast %53 : vector<1x4x32xbf16> to vector<4x32xbf16>
    %cst_28 = arith.constant dense<0.000000e+00> : vector<256x32xf32>
    %55 = tpu.matmul %52, %54, %cst_28 {dimension_numbers = #tpu.dot_dimension_numbers<[1], [0], [0], [1], [0, 0, 1, 1], [], []>} : vector<256x4xbf16>, vector<4x32xbf16>, vector<256x32xf32> -> vector<256x32xf32>
    %56 = arith.addf %50, %55 : vector<256x32xf32>
    %57 = vector.extract_strided_slice %5 {offsets = [2, 0, 0], sizes = [16, 16, 4], strides = [1, 1, 1]} : vector<18x16x4xbf16> to vector<16x16x4xbf16>
    %58 = vector.shape_cast %57 : vector<16x16x4xbf16> to vector<256x4xbf16>
    %c8 = arith.constant 8 : index
    %c0_29 = arith.constant 0 : index
    %c0_30 = arith.constant 0 : index
    %59 = vector.load %arg3[%c8, %c0_29, %c0_30] : memref<9x4x32xbf16, #tpu.memory_space<vmem>>, vector<1x4x32xbf16>
    %60 = vector.shape_cast %59 : vector<1x4x32xbf16> to vector<4x32xbf16>
    %cst_31 = arith.constant dense<0.000000e+00> : vector<256x32xf32>
    %61 = tpu.matmul %58, %60, %cst_31 {dimension_numbers = #tpu.dot_dimension_numbers<[1], [0], [0], [1], [0, 0, 1, 1], [], []>} : vector<256x4xbf16>, vector<4x32xbf16>, vector<256x32xf32> -> vector<256x32xf32>
    %62 = arith.addf %56, %61 : vector<256x32xf32>
    %cst_32 = arith.constant 0.000000e+00 : f32
    %63 = vector.broadcast %cst_32 : f32 to vector<256x32xf32>
    %64 = arith.maximumf %62, %63 : vector<256x32xf32>
    %65 = vector.shape_cast %64 : vector<256x32xf32> to vector<16x16x32xf32>
    %c0_33 = arith.constant 0 : index
    %c0_34 = arith.constant 0 : index
    %c0_35 = arith.constant 0 : index
    %c0_36 = arith.constant 0 : index
    %66 = vector.load %arg5[%c0_33, %c0_34, %c0_35, %c0_36] : memref<1x16x16x32xf32, #tpu.memory_space<vmem>>, vector<1x16x16x32xf32>
    %67 = vector.shape_cast %66 : vector<1x16x16x32xf32> to vector<16x16x32xf32>
    %68 = vector.shape_cast %65 : vector<16x16x32xf32> to vector<1x16x16x32xf32>
    tpu.vector_store %arg5[%c0_33, %c0_34, %c0_35, %c0_36], %68 {strides = array<i32>} : memref<1x16x16x32xf32, #tpu.memory_space<vmem>>, vector<1x16x16x32xf32>,
    return
  }
  func.func @transform_0(%arg0: i32, %arg1: i32) -> (i32, i32, i32, i32) {
    %c0_i32 = arith.constant 0 : i32
    %c0_i32_0 = arith.constant 0 : i32
    %c0_i32_1 = arith.constant 0 : i32
    %c0_i32_2 = arith.constant 0 : i32
    return %arg0, %c0_i32, %c0_i32_0, %c0_i32_1 : i32, i32, i32, i32
  }
  func.func @transform_1(%arg0: i32, %arg1: i32) -> (i32, i32, i32) {
    %c0_i32 = arith.constant 0 : i32
    %c0_i32_0 = arith.constant 0 : i32
    %c0_i32_1 = arith.constant 0 : i32
    return %c0_i32, %c0_i32_0, %arg1 : i32, i32, i32
  }
  func.func @transform_2(%arg0: i32, %arg1: i32) -> (i32, i32) {
    %c0_i32 = arith.constant 0 : i32
    %c0_i32_0 = arith.constant 0 : i32
    return %c0_i32, %arg1 : i32, i32
  }
  func.func @transform_3(%arg0: i32, %arg1: i32) -> (i32, i32, i32, i32) {
    %c0_i32 = arith.constant 0 : i32
    %c0_i32_0 = arith.constant 0 : i32
    %c0_i32_1 = arith.constant 0 : i32
    return %arg0, %c0_i32, %c0_i32_0, %arg1 : i32, i32, i32, i32
  }
}

</mosaic_0001>

<llo_original>
// kernel: tpu_custom_call.1
$region0: #{tpu_custom_call.1}
  #allocation0 [shape = 'u32[]', space=smem, size = 0x4, offset = 0x4, fixed_abs, tag = 'smem constant byte address 0x4 - core index']
  #allocation1 [shape = 'u32[72,128]{1,0:T(1,128)}', space=vmem, size = 0x9000, scoped, tag = 'internal scratch']
  %s0 = inlined_call_operand.vmem [shape: f32[2,18,18,4], index: 0, kind: input, shape index: {}]
  %s1 = inlined_call_operand.vmem [shape: bf16[9,4,32], index: 1, kind: input, shape index: {}]
  %s2 = inlined_call_operand.vmem [shape: f32[1,32], index: 2, kind: input, shape index: {}]
  %s3 = inlined_call_operand.hbm [shape: f32[2,16,16,32], index: 3, kind: output, shape index: {}]
  %s4 = sld [smem:[#allocation0]]
  $region45: #{tpu_custom_call.1} parent=0
    _
  %s6 = ssub.s32 1, %s4
  %s7 = scalar_select 0, %s6, %s4
  $region1: #{tpu_custom_call.1} parent=0
    #allocation2 [shape = 'u8[262144]{0}', space=vmem, size = 0x40000, scoped, tag = 'output window, operand 0']
    #allocation3 [shape = 's32[2]{0}', space=sflag, size = 0x8, scoped, tag = 'scoped memory for tpu_custom_call.1']
    %8 = vsyncpa [#allocation3], 0
    %s9 = scalar_lea.sflag [#allocation3], 1
    %10 = vsyncpa %s9, 0
    loop: start=0, step=1, limit=4
    $region2: #{tpu_custom_call.1} parent=1 // loop_pre_header
      _
    $region3: #{tpu_custom_call.1} parent=1 // loop_header
      %s12 = sphi 0, %s16
      %p13 = scmp.ge.s32.totalorder %s12, 4
      %s19 = sphi 0, %s31
      %s20 = sphi 0, %s27
      %s21 = sphi 0, %s19
      %s22 = sphi 0, %s20
      %s23 = sphi 0, %s21
      %s24 = sphi 0, %s22
      %s34 = sphi 0, %s36
      %s37 = sphi 0, %s34
      %s38 = sphi 0, %s37
      %s54 = sphi 0, %s38
      %s60 = sphi 0, %s62
      %s63 = sphi 0, %s60
      %s64 = sphi 0, %s63
      %s80 = sphi 0, %s64
      %s86 = sphi 0, %s88
      %s89 = sphi 0, %s86
      %s90 = sphi 0, %s89
      %s106 = sphi 0, %s90
      %s114 = sphi 0, %s116
      %s117 = sphi 0, %s114
      %s118 = sphi 0, %s117
      %s134 = sphi 0, %s118
    $region4: #{tpu_custom_call.1} parent=1 // loop_header_branch
      %15 = sbr.rel (%p13) target = $region8
    $region5: #{tpu_custom_call.1} parent=1 // loop_body
      %s17 = ssub.s32 %s12, 1
      %s18 = ssub.s32 %s12, 2
      %s25 = sadd.s32 1, %s20
      %p26 = scmp.ge.s32.totalorder %s25, 1
      %s27 = scalar_select %p26, 0, %s25
      %s28 = sadd.s32 1, %s19
      %s29 = scalar_select %p26, %s28, %s19
      %p30 = scmp.ge.s32.totalorder %s29, 2
      %s31 = scalar_select %p30, 0, %s29
      %s32 = ssub.s32 %s19, %s31
      %p33 = scmp.eq.s32.totalorder %s32, 0
      %s35 = sadd.s32 %s34, 1
      %s36 = scalar_select %p33, %s34, %s35
      %p39 = pneg %p33
      %p40 = scmp.eq.s32.totalorder %s12, 1
      %p41 = por %p39, %p40
      %p42 = scmp.ne.s32.totalorder %s34, %s37
      %p43 = scmp.eq.s32.totalorder %s12, 0
      %p44 = por %p42, %p43
      %p45 = scmp.ne.s32.totalorder %s34, %s37
      %p46 = scmp.eq.s32.totalorder %s17, 1
      %p47 = por %p45, %p46
      %p48 = scmp.ne.s32.totalorder %s37, %s38
      %p49 = scmp.eq.s32.totalorder %s17, 0
      %p50 = por %p48, %p49
      %p51 = scmp.ne.s32.totalorder %s37, %s38
      %p52 = scmp.eq.s32.totalorder %s18, 1
      %p53 = por %p51, %p52
      %p55 = scmp.ne.s32.totalorder %s38, %s54
      %p56 = scmp.eq.s32.totalorder %s18, 0
      %p57 = por %p55, %p56
      %s58 = ssub.s32 %s20, %s27
      %p59 = scmp.eq.s32.totalorder %s58, 0
      %s61 = sadd.s32 %s60, 1
      %s62 = scalar_select %p59, %s60, %s61
      %p65 = pneg %p59
      %p66 = scmp.eq.s32.totalorder %s12, 1
      %p67 = por %p65, %p66
      %p68 = scmp.ne.s32.totalorder %s60, %s63
      %p69 = scmp.eq.s32.totalorder %s12, 0
      %p70 = por %p68, %p69
      %p71 = scmp.ne.s32.totalorder %s60, %s63
      %p72 = scmp.eq.s32.totalorder %s17, 1
      %p73 = por %p71, %p72
      %p74 = scmp.ne.s32.totalorder %s63, %s64
      %p75 = scmp.eq.s32.totalorder %s17, 0
      %p76 = por %p74, %p75
      %p77 = scmp.ne.s32.totalorder %s63, %s64
      %p78 = scmp.eq.s32.totalorder %s18, 1
      %p79 = por %p77, %p78
      %p81 = scmp.ne.s32.totalorder %s64, %s80
      %p82 = scmp.eq.s32.totalorder %s18, 0
      %p83 = por %p81, %p82
      %s84 = ssub.s32 %s20, %s27
      %p85 = scmp.eq.s32.totalorder %s84, 0
      %s87 = sadd.s32 %s86, 1
      %s88 = scalar_select %p85, %s86, %s87
      %p91 = pneg %p85
      %p92 = scmp.eq.s32.totalorder %s12, 1
      %p93 = por %p91, %p92
      %p94 = scmp.ne.s32.totalorder %s86, %s89
      %p95 = scmp.eq.s32.totalorder %s12, 0
      %p96 = por %p94, %p95
      %p97 = scmp.ne.s32.totalorder %s86, %s89
      %p98 = scmp.eq.s32.totalorder %s17, 1
      %p99 = por %p97, %p98
      %p100 = scmp.ne.s32.totalorder %s89, %s90
      %p101 = scmp.eq.s32.totalorder %s17, 0
      %p102 = por %p100, %p101
      %p103 = scmp.ne.s32.totalorder %s89, %s90
      %p104 = scmp.eq.s32.totalorder %s18, 1
      %p105 = por %p103, %p104
      %p107 = scmp.ne.s32.totalorder %s90, %s106
      %p108 = scmp.eq.s32.totalorder %s18, 0
      %p109 = por %p107, %p108
      %s110 = ssub.s32 %s19, %s31
      %s111 = ssub.s32 %s20, %s27
      %s112 = sor.u32 %s110, %s111
      %p113 = scmp.eq.s32.totalorder %s112, 0
      %s115 = sadd.s32 %s114, 1
      %s116 = scalar_select %p113, %s114, %s115
      %p119 = pneg %p113
      %p120 = scmp.eq.s32.totalorder %s12, 1
      %p121 = por %p119, %p120
      %p122 = scmp.ne.s32.totalorder %s114, %s117
      %p123 = scmp.eq.s32.totalorder %s12, 0
      %p124 = por %p122, %p123
      %p125 = scmp.ne.s32.totalorder %s114, %s117
      %p126 = scmp.eq.s32.totalorder %s17, 1
      %p127 = por %p125, %p126
      %p128 = scmp.ne.s32.totalorder %s117, %s118
      %p129 = scmp.eq.s32.totalorder %s17, 0
      %p130 = por %p128, %p129
      %p131 = scmp.ne.s32.totalorder %s117, %s118
      %p132 = scmp.eq.s32.totalorder %s18, 1
      %p133 = por %p131, %p132
      %p135 = scmp.ne.s32.totalorder %s118, %s134
      %p136 = scmp.eq.s32.totalorder %s18, 0
      %p137 = por %p135, %p136
      %p138 = scmp.le.s32.totalorder 1, %s12
      %p139 = scmp.lt.s32.totalorder %s12, 3
      %p140 = pnand %p138, %p139
      %p141 = pneg %p140
      // Predicated region
      $region9: #{tpu_custom_call.1} parent=5 // pred_check
        _
      $region10: #{tpu_custom_call.1} parent=5 // pred_check_branch
        %143 = sbr.rel (%p140) target = $region12
      $region11: #{tpu_custom_call.1} parent=5 // pred_region
        %s144 = ssub.s32 %s12, 1
        // Predicated region
        $region13: #{tpu_custom_call.1} parent=11 // pred_check
          %p145 = pneg %p76
        $region14: #{tpu_custom_call.1} parent=11 // pred_check_branch
          %147 = sbr.rel (%p145) target = $region16
        $region15: #{tpu_custom_call.1} parent=11 // pred_region
          %p148 = scmp.lt.s32.totalorder %s22, 0
          %s149 = scalar_select %p148, %s22, 0
          %s150 = smul.addr %s149, 2
          %s151 = scalar_lea.vmem %s1, %s150
        $region16: #{tpu_custom_call.1} parent=11 // pred_fallthru
          _
        // Predicated region
        $region17: #{tpu_custom_call.1} parent=11 // pred_check
          %p152 = pneg %p102
        $region18: #{tpu_custom_call.1} parent=11 // pred_check_branch
          %154 = sbr.rel (%p152) target = $region20
        $region19: #{tpu_custom_call.1} parent=11 // pred_region
          %p155 = scmp.lt.s32.totalorder %s22, 0
          %s156 = scalar_select %p155, %s22, 0
          %s157 = scalar_lea.vmem %s2, %s156
        $region20: #{tpu_custom_call.1} parent=11 // pred_fallthru
          _
      $region12: #{tpu_custom_call.1} parent=5 // pred_fallthru
        _
      %p158 = scmp.lt.s32.totalorder %s12, 2
      // Predicated region
      $region21: #{tpu_custom_call.1} parent=5 // pred_check
        %p159 = pneg %p158
      $region22: #{tpu_custom_call.1} parent=5 // pred_check_branch
        %161 = sbr.rel (%p159) target = $region24
      $region23: #{tpu_custom_call.1} parent=5 // pred_region
        // Predicated region
        $region25: #{tpu_custom_call.1} parent=23 // pred_check
          %p162 = pneg %p44
        $region26: #{tpu_custom_call.1} parent=23 // pred_check_branch
          %164 = sbr.rel (%p162) target = $region28
        $region27: #{tpu_custom_call.1} parent=23 // pred_region
          %p165 = scmp.lt.s32.totalorder %s19, 1
          %s166 = scalar_select %p165, %s19, 1
          %s167 = smul.addr %s166, 54
          %s168 = smul.addr %s167, 8
          %s169 = scalar_lea.vmem %s0, %s168
        $region28: #{tpu_custom_call.1} parent=23 // pred_fallthru
          _
      $region24: #{tpu_custom_call.1} parent=5 // pred_fallthru
        _
      %p170 = scmp.le.s32.totalorder 1, %s12
      %p171 = scmp.lt.s32.totalorder %s12, 3
      %p172 = pnand %p170, %p171
      %p173 = pneg %p172
      // Predicated region
      $region29: #{tpu_custom_call.1} parent=5 // pred_check
        _
      $region30: #{tpu_custom_call.1} parent=5 // pred_check_branch
        %175 = sbr.rel (%p172) target = $region32
      $region31: #{tpu_custom_call.1} parent=5 // pred_region
        %s176 = ssub.s32 %s12, 1
        %p177 = scmp.lt.s32.totalorder %s21, 1
        %s178 = scalar_select %p177, %s21, 1
        %s179 = smul.addr %s178, 54
        %s180 = smul.addr %s179, 8
        %s181 = scalar_lea.vmem %s0, %s180
        %p182 = pneg %p50
        %p183 = pneg %p47
        %p184 = scmp.lt.s32.totalorder %s22, 0
        %s185 = scalar_select %p184, %s22, 0
        %s186 = smul.addr %s185, 2
        %s187 = scalar_lea.vmem %s1, %s186
        %p188 = pneg %p76
        %p189 = pneg %p73
        %p190 = scmp.lt.s32.totalorder %s22, 0
        %s191 = scalar_select %p190, %s22, 0
        %s192 = scalar_lea.vmem %s2, %s191
        %p193 = pneg %p102
        %p194 = pneg %p99
        %p195 = pneg %p130
        %p196 = pneg %p127
        %s197 = sand.u32 %s117, 1
        %s198 = scalar_lea.sflag [#allocation3], %s197
        %s199 = sand.u32 %s117, 1
        %s200 = smul.addr %s199, 256
        %s201 = scalar_lea.vmem [#allocation2], %s200
        %p202 = scmp.lt.s32.totalorder %s21, 1
        %s203 = scalar_select %p202, %s21, 1
        %s204 = smul.addr %s203, 54
        %s205 = smul.addr %s204, 8
        %s206 = scalar_lea.vmem %s0, %s205
        %p207 = scmp.lt.s32.totalorder %s22, 0
        %s208 = scalar_select %p207, %s22, 0
        %s209 = smul.addr %s208, 2
        %s210 = scalar_lea.vmem %s1, %s209
        %p211 = scmp.lt.s32.totalorder %s22, 0
        %s212 = scalar_select %p211, %s22, 0
        %s213 = scalar_lea.vmem %s2, %s212
        %v215 = vld [vmem:[%s206] sm:$0xff]
        %v216 = vld [vmem:[%s206 + $0x8] sm:$0xff]
        %v217 = vld [vmem:[%s206 + $0x10] sm:$0x3]
        %v218 = vld [vmem:[%s206 + $0x18] sm:$0xff]
        %v219 = vld [vmem:[%s206 + $0x20] sm:$0xff]
        %v220 = vld [vmem:[%s206 + $0x28] sm:$0x3]
        %v221 = vld [vmem:[%s206 + $0x30] sm:$0xff]
        %v222 = vld [vmem:[%s206 + $0x38] sm:$0xff]
        %v223 = vld [vmem:[%s206 + $0x40] sm:$0x3]
        %v224 = vld [vmem:[%s206 + $0x48] sm:$0xff]
        %v225 = vld [vmem:[%s206 + $0x50] sm:$0xff]
        %v226 = vld [vmem:[%s206 + $0x58] sm:$0x3]
        %v227 = vld [vmem:[%s206 + $0x60] sm:$0xff]
        %v228 = vld [vmem:[%s206 + $0x68] sm:$0xff]
        %v229 = vld [vmem:[%s206 + $0x70] sm:$0x3]
        %v230 = vld [vmem:[%s206 + $0x78] sm:$0xff]
        %v231 = vld [vmem:[%s206 + $0x80] sm:$0xff]
        %v232 = vld [vmem:[%s206 + $0x88] sm:$0x3]
        %v233 = vld [vmem:[%s206 + $0x90] sm:$0xff]
        %v234 = vld [vmem:[%s206 + $0x98] sm:$0xff]
        %v235 = vld [vmem:[%s206 + $0xa0] sm:$0x3]
        %v236 = vld [vmem:[%s206 + $0xa8] sm:$0xff]
        %v237 = vld [vmem:[%s206 + $0xb0] sm:$0xff]
        %v238 = vld [vmem:[%s206 + $0xb8] sm:$0x3]
        %v239 = vld [vmem:[%s206 + $0xc0] sm:$0xff]
        %v240 = vld [vmem:[%s206 + $0xc8] sm:$0xff]
        %v241 = vld [vmem:[%s206 + $0xd0] sm:$0x3]
        %v242 = vld [vmem:[%s206 + $0xd8] sm:$0xff]
        %v243 = vld [vmem:[%s206 + $0xe0] sm:$0xff]
        %v244 = vld [vmem:[%s206 + $0xe8] sm:$0x3]
        %v245 = vld [vmem:[%s206 + $0xf0] sm:$0xff]
        %v246 = vld [vmem:[%s206 + $0xf8] sm:$0xff]
        %v247 = vld [vmem:[%s206 + $0x100] sm:$0x3]
        %v248 = vld [vmem:[%s206 + $0x108] sm:$0xff]
        %v249 = vld [vmem:[%s206 + $0x110] sm:$0xff]
        %v250 = vld [vmem:[%s206 + $0x118] sm:$0x3]
        %v251 = vld [vmem:[%s206 + $0x120] sm:$0xff]
        %v252 = vld [vmem:[%s206 + $0x128] sm:$0xff]
        %v253 = vld [vmem:[%s206 + $0x130] sm:$0x3]
        %v254 = vld [vmem:[%s206 + $0x138] sm:$0xff]
        %v255 = vld [vmem:[%s206 + $0x140] sm:$0xff]
        %v256 = vld [vmem:[%s206 + $0x148] sm:$0x3]
        %v257 = vld [vmem:[%s206 + $0x150] sm:$0xff]
        %v258 = vld [vmem:[%s206 + $0x158] sm:$0xff]
        %v259 = vld [vmem:[%s206 + $0x160] sm:$0x3]
        %v260 = vld [vmem:[%s206 + $0x168] sm:$0xff]
        %v261 = vld [vmem:[%s206 + $0x170] sm:$0xff]
        %v262 = vld [vmem:[%s206 + $0x178] sm:$0x3]
        %v263 = vld [vmem:[%s206 + $0x180] sm:$0xff]
        %v264 = vld [vmem:[%s206 + $0x188] sm:$0xff]
        %v265 = vld [vmem:[%s206 + $0x190] sm:$0x3]
        %v266 = vld [vmem:[%s206 + $0x198] sm:$0xff]
        %v267 = vld [vmem:[%s206 + $0x1a0] sm:$0xff]
        %v268 = vld [vmem:[%s206 + $0x1a8] sm:$0x3]
        %v269 = vpack.c.bf16 %v215, %v215
        %v270 = vpack.c.bf16 %v216, %v216
        %v271 = vpack.c.bf16 %v217, %v217
        %v272 = vpack.c.bf16 %v218, %v218
        %v273 = vpack.c.bf16 %v219, %v219
        %v274 = vpack.c.bf16 %v220, %v220
        %v275 = vpack.c.bf16 %v221, %v221
        %v276 = vpack.c.bf16 %v222, %v222
        %v277 = vpack.c.bf16 %v223, %v223
        %v278 = vpack.c.bf16 %v224, %v224
        %v279 = vpack.c.bf16 %v225, %v225
        %v280 = vpack.c.bf16 %v226, %v226
        %v281 = vpack.c.bf16 %v227, %v227
        %v282 = vpack.c.bf16 %v228, %v228
        %v283 = vpack.c.bf16 %v229, %v229
        %v284 = vpack.c.bf16 %v230, %v230
        %v285 = vpack.c.bf16 %v231, %v231
        %v286 = vpack.c.bf16 %v232, %v232
        %v287 = vpack.c.bf16 %v233, %v233
        %v288 = vpack.c.bf16 %v234, %v234
        %v289 = vpack.c.bf16 %v235, %v235
        %v290 = vpack.c.bf16 %v236, %v236
        %v291 = vpack.c.bf16 %v237, %v237
        %v292 = vpack.c.bf16 %v238, %v238
        %v293 = vpack.c.bf16 %v239, %v239
        %v294 = vpack.c.bf16 %v240, %v240
        %v295 = vpack.c.bf16 %v241, %v241
        %v296 = vpack.c.bf16 %v242, %v242
        %v297 = vpack.c.bf16 %v243, %v243
        %v298 = vpack.c.bf16 %v244, %v244
        %v299 = vpack.c.bf16 %v245, %v245
        %v300 = vpack.c.bf16 %v246, %v246
        %v301 = vpack.c.bf16 %v247, %v247
        %v302 = vpack.c.bf16 %v248, %v248
        %v303 = vpack.c.bf16 %v249, %v249
        %v304 = vpack.c.bf16 %v250, %v250
        %v305 = vpack.c.bf16 %v251, %v251
        %v306 = vpack.c.bf16 %v252, %v252
        %v307 = vpack.c.bf16 %v253, %v253
        %v308 = vpack.c.bf16 %v254, %v254
        %v309 = vpack.c.bf16 %v255, %v255
        %v310 = vpack.c.bf16 %v256, %v256
        %v311 = vpack.c.bf16 %v257, %v257
        %v312 = vpack.c.bf16 %v258, %v258
        %v313 = vpack.c.bf16 %v259, %v259
        %v314 = vpack.c.bf16 %v260, %v260
        %v315 = vpack.c.bf16 %v261, %v261
        %v316 = vpack.c.bf16 %v262, %v262
        %v317 = vpack.c.bf16 %v263, %v263
        %v318 = vpack.c.bf16 %v264, %v264
        %v319 = vpack.c.bf16 %v265, %v265
        %v320 = vpack.c.bf16 %v266, %v266
        %v321 = vpack.c.bf16 %v267, %v267
        %v322 = vpack.c.bf16 %v268, %v268
        %v323 = vld [vmem:[%s213] sm:$0x1]
        %v325 = vperm.slane %v323, 0
        %v327 = vld [vmem:[%s210] sm:$0x3]
        %v360 = vunpack.c.l.b16 %v269
        %v361 = vunpack.c.l.b16 %v270
        %v362 = vunpack.c.l.b16 %v272
        %v363 = vunpack.c.l.b16 %v273
        %v364 = vunpack.c.l.b16 %v275
        %v365 = vunpack.c.l.b16 %v276
        %v366 = vunpack.c.l.b16 %v278
        %v367 = vunpack.c.l.b16 %v279
        %v368 = vunpack.c.l.b16 %v281
        %v369 = vunpack.c.l.b16 %v282
        %v370 = vunpack.c.l.b16 %v284
        %v371 = vunpack.c.l.b16 %v285
        %v372 = vunpack.c.l.b16 %v287
        %v373 = vunpack.c.l.b16 %v288
        %v374 = vunpack.c.l.b16 %v290
        %v375 = vunpack.c.l.b16 %v291
        %v376 = vunpack.c.l.b16 %v293
        %v377 = vunpack.c.l.b16 %v294
        %v378 = vunpack.c.l.b16 %v296
        %v379 = vunpack.c.l.b16 %v297
        %v380 = vunpack.c.l.b16 %v299
        %v381 = vunpack.c.l.b16 %v300
        %v382 = vunpack.c.l.b16 %v302
        %v383 = vunpack.c.l.b16 %v303
        %v384 = vunpack.c.l.b16 %v305
        %v385 = vunpack.c.l.b16 %v306
        %v386 = vunpack.c.l.b16 %v308
        %v387 = vunpack.c.l.b16 %v309
        %v388 = vunpack.c.l.b16 %v311
        %v389 = vunpack.c.l.b16 %v312
        %v390 = vunpack.c.l.b16 %v314
        %v391 = vunpack.c.l.b16 %v315
        %v392 = vpack.c.b16 %v361, %v360
        %v393 = vpack.c.b16 %v363, %v362
        %v394 = vpack.c.b16 %v365, %v364
        %v395 = vpack.c.b16 %v367, %v366
        %v396 = vpack.c.b16 %v369, %v368
        %v397 = vpack.c.b16 %v371, %v370
        %v398 = vpack.c.b16 %v373, %v372
        %v399 = vpack.c.b16 %v375, %v374
        %v400 = vpack.c.b16 %v377, %v376
        %v401 = vpack.c.b16 %v379, %v378
        %v402 = vpack.c.b16 %v381, %v380
        %v403 = vpack.c.b16 %v383, %v382
        %v404 = vpack.c.b16 %v385, %v384
        %v405 = vpack.c.b16 %v387, %v386
        %v406 = vpack.c.b16 %v389, %v388
        %v407 = vpack.c.b16 %v391, %v390
        %vm408 = vcmask 31744
        %v410 = vsel %vm408, %v392, 0
        %v413 = vsel %vm408, %v393, 0
        %v416 = vsel %vm408, %v394, 0
        %v419 = vsel %vm408, %v395, 0
        %v422 = vsel %vm408, %v396, 0
        %v425 = vsel %vm408, %v397, 0
        %v428 = vsel %vm408, %v398, 0
        %v431 = vsel %vm408, %v399, 0
        %v434 = vsel %vm408, %v400, 0
        %v437 = vsel %vm408, %v401, 0
        %v440 = vsel %vm408, %v402, 0
        %v443 = vsel %vm408, %v403, 0
        %v446 = vsel %vm408, %v404, 0
        %v449 = vsel %vm408, %v405, 0
        %v452 = vsel %vm408, %v406, 0
        %v455 = vsel %vm408, %v407, 0
        %vm457 = vcmask 1041408
        %v459 = vsel %vm457, %v327, 0
        %461 = vmatpush.bf16.msra.mxu0 0
        %462 = vmatpush.bf16.msra.mxu0 0
        %463 = vmatpush.bf16.msra.mxu0 0
        %464 = vmatpush.bf16.msra.mxu0 0
        %465 = vmatpush.bf16.msra.mxu0 0
        %466 = vmatpush.bf16.msra.mxu0 0
        %467 = vmatpush.bf16.msra.mxu0 0
        %468 = vmatpush.bf16.msra.mxu0 %v459
        %469 = vmatmul.bf16.gmra.mxu0 %v410
        %v470 = vpop.f32.mrf.mxu0
        %v471 = vadd.f32 0.0, %v470
        %v472 = vpop.f32.mrf.mxu0
        %v473 = vadd.f32 0.0, %v472
        %474 = vmatmul.bf16.gmra.mxu0 %v413
        %v475 = vpop.f32.mrf.mxu0
        %v476 = vadd.f32 0.0, %v475
        %v477 = vpop.f32.mrf.mxu0
        %v478 = vadd.f32 0.0, %v477
        %479 = vmatmul.bf16.gmra.mxu0 %v416
        %v480 = vpop.f32.mrf.mxu0
        %v481 = vadd.f32 0.0, %v480
        %v482 = vpop.f32.mrf.mxu0
        %v483 = vadd.f32 0.0, %v482
        %484 = vmatmul.bf16.gmra.mxu0 %v419
        %v485 = vpop.f32.mrf.mxu0
        %v486 = vadd.f32 0.0, %v485
        %v487 = vpop.f32.mrf.mxu0
        %v488 = vadd.f32 0.0, %v487
        %489 = vmatmul.bf16.gmra.mxu0 %v422
        %v490 = vpop.f32.mrf.mxu0
        %v491 = vadd.f32 0.0, %v490
        %v492 = vpop.f32.mrf.mxu0
        %v493 = vadd.f32 0.0, %v492
        %494 = vmatmul.bf16.gmra.mxu0 %v425
        %v495 = vpop.f32.mrf.mxu0
        %v496 = vadd.f32 0.0, %v495
        %v497 = vpop.f32.mrf.mxu0
        %v498 = vadd.f32 0.0, %v497
        %499 = vmatmul.bf16.gmra.mxu0 %v428
        %v500 = vpop.f32.mrf.mxu0
        %v501 = vadd.f32 0.0, %v500
        %v502 = vpop.f32.mrf.mxu0
        %v503 = vadd.f32 0.0, %v502
        %504 = vmatmul.bf16.gmra.mxu0 %v431
        %v505 = vpop.f32.mrf.mxu0
        %v506 = vadd.f32 0.0, %v505
        %v507 = vpop.f32.mrf.mxu0
        %v508 = vadd.f32 0.0, %v507
        %509 = vmatmul.bf16.gmra.mxu0 %v434
        %v510 = vpop.f32.mrf.mxu0
        %v511 = vadd.f32 0.0, %v510
        %v512 = vpop.f32.mrf.mxu0
        %v513 = vadd.f32 0.0, %v512
        %514 = vmatmul.bf16.gmra.mxu0 %v437
        %v515 = vpop.f32.mrf.mxu0
        %v516 = vadd.f32 0.0, %v515
        %v517 = vpop.f32.mrf.mxu0
        %v518 = vadd.f32 0.0, %v517
        %519 = vmatmul.bf16.gmra.mxu0 %v440
        %v520 = vpop.f32.mrf.mxu0
        %v521 = vadd.f32 0.0, %v520
        %v522 = vpop.f32.mrf.mxu0
        %v523 = vadd.f32 0.0, %v522
        %524 = vmatmul.bf16.gmra.mxu0 %v443
        %v525 = vpop.f32.mrf.mxu0
        %v526 = vadd.f32 0.0, %v525
        %v527 = vpop.f32.mrf.mxu0
        %v528 = vadd.f32 0.0, %v527
        %529 = vmatmul.bf16.gmra.mxu0 %v446
        %v530 = vpop.f32.mrf.mxu0
        %v531 = vadd.f32 0.0, %v530
        %v532 = vpop.f32.mrf.mxu0
        %v533 = vadd.f32 0.0, %v532
        %534 = vmatmul.bf16.gmra.mxu0 %v449
        %v535 = vpop.f32.mrf.mxu0
        %v536 = vadd.f32 0.0, %v535
        %v537 = vpop.f32.mrf.mxu0
        %v538 = vadd.f32 0.0, %v537
        %539 = vmatmul.bf16.gmra.mxu0 %v452
        %v540 = vpop.f32.mrf.mxu0
        %v541 = vadd.f32 0.0, %v540
        %v542 = vpop.f32.mrf.mxu0
        %v543 = vadd.f32 0.0, %v542
        %544 = vmatmul.bf16.gmra.mxu0 %v455
        %v545 = vpop.f32.mrf.mxu0
        %v546 = vadd.f32 0.0, %v545
        %v547 = vpop.f32.mrf.mxu0
        %v548 = vadd.f32 0.0, %v547
        %549 = vdwg.mxu0
        %v550 = vadd.f32 %v325, %v471
        %v551 = vadd.f32 %v325, %v473
        %v552 = vadd.f32 %v325, %v476
        %v553 = vadd.f32 %v325, %v478
        %v554 = vadd.f32 %v325, %v481
        %v555 = vadd.f32 %v325, %v483
        %v556 = vadd.f32 %v325, %v486
        %v557 = vadd.f32 %v325, %v488
        %v558 = vadd.f32 %v325, %v491
        %v559 = vadd.f32 %v325, %v493
        %v560 = vadd.f32 %v325, %v496
        %v561 = vadd.f32 %v325, %v498
        %v562 = vadd.f32 %v325, %v501
        %v563 = vadd.f32 %v325, %v503
        %v564 = vadd.f32 %v325, %v506
        %v565 = vadd.f32 %v325, %v508
        %v566 = vadd.f32 %v325, %v511
        %v567 = vadd.f32 %v325, %v513
        %v568 = vadd.f32 %v325, %v516
        %v569 = vadd.f32 %v325, %v518
        %v570 = vadd.f32 %v325, %v521
        %v571 = vadd.f32 %v325, %v523
        %v572 = vadd.f32 %v325, %v526
        %v573 = vadd.f32 %v325, %v528
        %v574 = vadd.f32 %v325, %v531
        %v575 = vadd.f32 %v325, %v533
        %v576 = vadd.f32 %v325, %v536
        %v577 = vadd.f32 %v325, %v538
        %v578 = vadd.f32 %v325, %v541
        %v579 = vadd.f32 %v325, %v543
        %v580 = vadd.f32 %v325, %v546
        %v581 = vadd.f32 %v325, %v548
        %vm582 = vsmask.f32 3328
        %vm583 = vsmask.f32 7440
        %vm584 = vmor %vm582, %vm583
        %v586 = vshrl.u32 %v269, 16
        %v588 = vrot.slane %v586, 4
        %v589 = vshll.u32 %v269, 16
        %v591 = vrot.slane %v589, 5
        %v592 = vor.u32 %v588, %v591
        %v593 = vrot.slane %v592, 4
        %v595 = vshll.u32 %v270, 16
        %v597 = vrot.slane %v595, 5
        %v598 = vsel %vm584, %v593, %v597
        %v599 = vshrl.u32 %v270, 16
        %v601 = vrot.slane %v599, 4
        %v602 = vor.u32 %v601, %v597
        %v603 = vrot.slane %v602, 4
        %v605 = vshll.u32 %v271, 16
        %v607 = vrot.slane %v605, 5
        %v608 = vsel %vm584, %v603, %v607
        %v610 = vshrl.u32 %v272, 16
        %v612 = vrot.slane %v610, 4
        %v613 = vshll.u32 %v272, 16
        %v615 = vrot.slane %v613, 5
        %v616 = vor.u32 %v612, %v615
        %v617 = vrot.slane %v616, 4
        %v619 = vshll.u32 %v273, 16
        %v621 = vrot.slane %v619, 5
        %v622 = vsel %vm584, %v617, %v621
        %v623 = vshrl.u32 %v273, 16
        %v625 = vrot.slane %v623, 4
        %v626 = vor.u32 %v625, %v621
        %v627 = vrot.slane %v626, 4
        %v629 = vshll.u32 %v274, 16
        %v631 = vrot.slane %v629, 5
        %v632 = vsel %vm584, %v627, %v631
        %v634 = vshrl.u32 %v275, 16
        %v636 = vrot.slane %v634, 4
        %v637 = vshll.u32 %v275, 16
        %v639 = vrot.slane %v637, 5
        %v640 = vor.u32 %v636, %v639
        %v641 = vrot.slane %v640, 4
        %v643 = vshll.u32 %v276, 16
        %v645 = vrot.slane %v643, 5
        %v646 = vsel %vm584, %v641, %v645
        %v647 = vshrl.u32 %v276, 16
        %v649 = vrot.slane %v647, 4
        %v650 = vor.u32 %v649, %v645
        %v651 = vrot.slane %v650, 4
        %v653 = vshll.u32 %v277, 16
        %v655 = vrot.slane %v653, 5
        %v656 = vsel %vm584, %v651, %v655
        %v658 = vshrl.u32 %v278, 16
        %v660 = vrot.slane %v658, 4
        %v661 = vshll.u32 %v278, 16
        %v663 = vrot.slane %v661, 5
        %v664 = vor.u32 %v660, %v663
        %v665 = vrot.slane %v664, 4
        %v667 = vshll.u32 %v279, 16
        %v669 = vrot.slane %v667, 5
        %v670 = vsel %vm584, %v665, %v669
        %v671 = vshrl.u32 %v279, 16
        %v673 = vrot.slane %v671, 4
        %v674 = vor.u32 %v673, %v669
        %v675 = vrot.slane %v674, 4
        %v677 = vshll.u32 %v280, 16
        %v679 = vrot.slane %v677, 5
        %v680 = vsel %vm584, %v675, %v679
        %v682 = vshrl.u32 %v281, 16
        %v684 = vrot.slane %v682, 4
        %v685 = vshll.u32 %v281, 16
        %v687 = vrot.slane %v685, 5
        %v688 = vor.u32 %v684, %v687
        %v689 = vrot.slane %v688, 4
        %v691 = vshll.u32 %v282, 16
        %v693 = vrot.slane %v691, 5
        %v694 = vsel %vm584, %v689, %v693
        %v695 = vshrl.u32 %v282, 16
        %v697 = vrot.slane %v695, 4
        %v698 = vor.u32 %v697, %v693
        %v699 = vrot.slane %v698, 4
        %v701 = vshll.u32 %v283, 16
        %v703 = vrot.slane %v701, 5
        %v704 = vsel %vm584, %v699, %v703
        %v706 = vshrl.u32 %v284, 16
        %v708 = vrot.slane %v706, 4
        %v709 = vshll.u32 %v284, 16
        %v711 = vrot.slane %v709, 5
        %v712 = vor.u32 %v708, %v711
        %v713 = vrot.slane %v712, 4
        %v715 = vshll.u32 %v285, 16
        %v717 = vrot.slane %v715, 5
        %v718 = vsel %vm584, %v713, %v717
        %v719 = vshrl.u32 %v285, 16
        %v721 = vrot.slane %v719, 4
        %v722 = vor.u32 %v721, %v717
        %v723 = vrot.slane %v722, 4
        %v725 = vshll.u32 %v286, 16
        %v727 = vrot.slane %v725, 5
        %v728 = vsel %vm584, %v723, %v727
        %v730 = vshrl.u32 %v287, 16
        %v732 = vrot.slane %v730, 4
        %v733 = vshll.u32 %v287, 16
        %v735 = vrot.slane %v733, 5
        %v736 = vor.u32 %v732, %v735
        %v737 = vrot.slane %v736, 4
        %v739 = vshll.u32 %v288, 16
        %v741 = vrot.slane %v739, 5
        %v742 = vsel %vm584, %v737, %v741
        %v743 = vshrl.u32 %v288, 16
        %v745 = vrot.slane %v743, 4
        %v746 = vor.u32 %v745, %v741
        %v747 = vrot.slane %v746, 4
        %v749 = vshll.u32 %v289, 16
        %v751 = vrot.slane %v749, 5
        %v752 = vsel %vm584, %v747, %v751
        %v754 = vshrl.u32 %v290, 16
        %v756 = vrot.slane %v754, 4
        %v757 = vshll.u32 %v290, 16
        %v759 = vrot.slane %v757, 5
        %v760 = vor.u32 %v756, %v759
        %v761 = vrot.slane %v760, 4
        %v763 = vshll.u32 %v291, 16
        %v765 = vrot.slane %v763, 5
        %v766 = vsel %vm584, %v761, %v765
        %v767 = vshrl.u32 %v291, 16
        %v769 = vrot.slane %v767, 4
        %v770 = vor.u32 %v769, %v765
        %v771 = vrot.slane %v770, 4
        %v773 = vshll.u32 %v292, 16
        %v775 = vrot.slane %v773, 5
        %v776 = vsel %vm584, %v771, %v775
        %v778 = vshrl.u32 %v293, 16
        %v780 = vrot.slane %v778, 4
        %v781 = vshll.u32 %v293, 16
        %v783 = vrot.slane %v781, 5
        %v784 = vor.u32 %v780, %v783
        %v785 = vrot.slane %v784, 4
        %v787 = vshll.u32 %v294, 16
        %v789 = vrot.slane %v787, 5
        %v790 = vsel %vm584, %v785, %v789
        %v791 = vshrl.u32 %v294, 16
        %v793 = vrot.slane %v791, 4
        %v794 = vor.u32 %v793, %v789
        %v795 = vrot.slane %v794, 4
        %v797 = vshll.u32 %v295, 16
        %v799 = vrot.slane %v797, 5
        %v800 = vsel %vm584, %v795, %v799
        %v802 = vshrl.u32 %v296, 16
        %v804 = vrot.slane %v802, 4
        %v805 = vshll.u32 %v296, 16
        %v807 = vrot.slane %v805, 5
        %v808 = vor.u32 %v804, %v807
        %v809 = vrot.slane %v808, 4
        %v811 = vshll.u32 %v297, 16
        %v813 = vrot.slane %v811, 5
        %v814 = vsel %vm584, %v809, %v813
        %v815 = vshrl.u32 %v297, 16
        %v817 = vrot.slane %v815, 4
        %v818 = vor.u32 %v817, %v813
        %v819 = vrot.slane %v818, 4
        %v821 = vshll.u32 %v298, 16
        %v823 = vrot.slane %v821, 5
        %v824 = vsel %vm584, %v819, %v823
        %v826 = vshrl.u32 %v299, 16
        %v828 = vrot.slane %v826, 4
        %v829 = vshll.u32 %v299, 16
        %v831 = vrot.slane %v829, 5
        %v832 = vor.u32 %v828, %v831
        %v833 = vrot.slane %v832, 4
        %v835 = vshll.u32 %v300, 16
        %v837 = vrot.slane %v835, 5
        %v838 = vsel %vm584, %v833, %v837
        %v839 = vshrl.u32 %v300, 16
        %v841 = vrot.slane %v839, 4
        %v842 = vor.u32 %v841, %v837
        %v843 = vrot.slane %v842, 4
        %v845 = vshll.u32 %v301, 16
        %v847 = vrot.slane %v845, 5
        %v848 = vsel %vm584, %v843, %v847
        %v850 = vshrl.u32 %v302, 16
        %v852 = vrot.slane %v850, 4
        %v853 = vshll.u32 %v302, 16
        %v855 = vrot.slane %v853, 5
        %v856 = vor.u32 %v852, %v855
        %v857 = vrot.slane %v856, 4
        %v859 = vshll.u32 %v303, 16
        %v861 = vrot.slane %v859, 5
        %v862 = vsel %vm584, %v857, %v861
        %v863 = vshrl.u32 %v303, 16
        %v865 = vrot.slane %v863, 4
        %v866 = vor.u32 %v865, %v861
        %v867 = vrot.slane %v866, 4
        %v869 = vshll.u32 %v304, 16
        %v871 = vrot.slane %v869, 5
        %v872 = vsel %vm584, %v867, %v871
        %v874 = vshrl.u32 %v305, 16
        %v876 = vrot.slane %v874, 4
        %v877 = vshll.u32 %v305, 16
        %v879 = vrot.slane %v877, 5
        %v880 = vor.u32 %v876, %v879
        %v881 = vrot.slane %v880, 4
        %v883 = vshll.u32 %v306, 16
        %v885 = vrot.slane %v883, 5
        %v886 = vsel %vm584, %v881, %v885
        %v887 = vshrl.u32 %v306, 16
        %v889 = vrot.slane %v887, 4
        %v890 = vor.u32 %v889, %v885
        %v891 = vrot.slane %v890, 4
        %v893 = vshll.u32 %v307, 16
        %v895 = vrot.slane %v893, 5
        %v896 = vsel %vm584, %v891, %v895
        %v898 = vshrl.u32 %v308, 16
        %v900 = vrot.slane %v898, 4
        %v901 = vshll.u32 %v308, 16
        %v903 = vrot.slane %v901, 5
        %v904 = vor.u32 %v900, %v903
        %v905 = vrot.slane %v904, 4
        %v907 = vshll.u32 %v309, 16
        %v909 = vrot.slane %v907, 5
        %v910 = vsel %vm584, %v905, %v909
        %v911 = vshrl.u32 %v309, 16
        %v913 = vrot.slane %v911, 4
        %v914 = vor.u32 %v913, %v909
        %v915 = vrot.slane %v914, 4
        %v917 = vshll.u32 %v310, 16
        %v919 = vrot.slane %v917, 5
        %v920 = vsel %vm584, %v915, %v919
        %v922 = vshrl.u32 %v311, 16
        %v924 = vrot.slane %v922, 4
        %v925 = vshll.u32 %v311, 16
        %v927 = vrot.slane %v925, 5
        %v928 = vor.u32 %v924, %v927
        %v929 = vrot.slane %v928, 4
        %v931 = vshll.u32 %v312, 16
        %v933 = vrot.slane %v931, 5
        %v934 = vsel %vm584, %v929, %v933
        %v935 = vshrl.u32 %v312, 16
        %v937 = vrot.slane %v935, 4
        %v938 = vor.u32 %v937, %v933
        %v939 = vrot.slane %v938, 4
        %v941 = vshll.u32 %v313, 16
        %v943 = vrot.slane %v941, 5
        %v944 = vsel %vm584, %v939, %v943
        %v946 = vshrl.u32 %v314, 16
        %v948 = vrot.slane %v946, 4
        %v949 = vshll.u32 %v314, 16
        %v951 = vrot.slane %v949, 5
        %v952 = vor.u32 %v948, %v951
        %v953 = vrot.slane %v952, 4
        %v955 = vshll.u32 %v315, 16
        %v957 = vrot.slane %v955, 5
        %v958 = vsel %vm584, %v953, %v957
        %v959 = vshrl.u32 %v315, 16
        %v961 = vrot.slane %v959, 4
        %v962 = vor.u32 %v961, %v957
        %v963 = vrot.slane %v962, 4
        %v965 = vshll.u32 %v316, 16
        %v967 = vrot.slane %v965, 5
        %v968 = vsel %vm584, %v963, %v967
        %s969 = scalar_lea.vmem %s210, 2
        %v970 = vld [vmem:[%s969] sm:$0x3]
        %v971 = vunpack.c.l.b16 %v598
        %v972 = vunpack.c.l.b16 %v608
        %v973 = vunpack.c.l.b16 %v622
        %v974 = vunpack.c.l.b16 %v632
        %v975 = vunpack.c.l.b16 %v646
        %v976 = vunpack.c.l.b16 %v656
        %v977 = vunpack.c.l.b16 %v670
        %v978 = vunpack.c.l.b16 %v680
        %v979 = vunpack.c.l.b16 %v694
        %v980 = vunpack.c.l.b16 %v704
        %v981 = vunpack.c.l.b16 %v718
        %v982 = vunpack.c.l.b16 %v728
        %v983 = vunpack.c.l.b16 %v742
        %v984 = vunpack.c.l.b16 %v752
        %v985 = vunpack.c.l.b16 %v766
        %v986 = vunpack.c.l.b16 %v776
        %v987 = vunpack.c.l.b16 %v790
        %v988 = vunpack.c.l.b16 %v800
        %v989 = vunpack.c.l.b16 %v814
        %v990 = vunpack.c.l.b16 %v824
        %v991 = vunpack.c.l.b16 %v838
        %v992 = vunpack.c.l.b16 %v848
        %v993 = vunpack.c.l.b16 %v862
        %v994 = vunpack.c.l.b16 %v872
        %v995 = vunpack.c.l.b16 %v886
        %v996 = vunpack.c.l.b16 %v896
        %v997 = vunpack.c.l.b16 %v910
        %v998 = vunpack.c.l.b16 %v920
        %v999 = vunpack.c.l.b16 %v934
        %v1000 = vunpack.c.l.b16 %v944
        %v1001 = vunpack.c.l.b16 %v958
        %v1002 = vunpack.c.l.b16 %v968
        %v1003 = vpack.c.b16 %v972, %v971
        %v1004 = vpack.c.b16 %v974, %v973
        %v1005 = vpack.c.b16 %v976, %v975
        %v1006 = vpack.c.b16 %v978, %v977
        %v1007 = vpack.c.b16 %v980, %v979
        %v1008 = vpack.c.b16 %v982, %v981
        %v1009 = vpack.c.b16 %v984, %v983
        %v1010 = vpack.c.b16 %v986, %v985
        %v1011 = vpack.c.b16 %v988, %v987
        %v1012 = vpack.c.b16 %v990, %v989
        %v1013 = vpack.c.b16 %v992, %v991
        %v1014 = vpack.c.b16 %v994, %v993
        %v1015 = vpack.c.b16 %v996, %v995
        %v1016 = vpack.c.b16 %v998, %v997
        %v1017 = vpack.c.b16 %v1000, %v999
        %v1018 = vpack.c.b16 %v1002, %v1001
        %v1020 = vsel %vm408, %v1003, 0
        %v1023 = vsel %vm408, %v1004, 0
        %v1026 = vsel %vm408, %v1005, 0
        %v1029 = vsel %vm408, %v1006, 0
        %v1032 = vsel %vm408, %v1007, 0
        %v1035 = vsel %vm408, %v1008, 0
        %v1038 = vsel %vm408, %v1009, 0
        %v1041 = vsel %vm408, %v1010, 0
        %v1044 = vsel %vm408, %v1011, 0
        %v1047 = vsel %vm408, %v1012, 0
        %v1050 = vsel %vm408, %v1013, 0
        %v1053 = vsel %vm408, %v1014, 0
        %v1056 = vsel %vm408, %v1015, 0
        %v1059 = vsel %vm408, %v1016, 0
        %v1062 = vsel %vm408, %v1017, 0
        %v1065 = vsel %vm408, %v1018, 0
        %v1068 = vsel %vm457, %v970, 0
        %1070 = vmatpush.bf16.msra.mxu0 0
        %1071 = vmatpush.bf16.msra.mxu0 0
        %1072 = vmatpush.bf16.msra.mxu0 0
        %1073 = vmatpush.bf16.msra.mxu0 0
        %1074 = vmatpush.bf16.msra.mxu0 0
        %1075 = vmatpush.bf16.msra.mxu0 0
        %1076 = vmatpush.bf16.msra.mxu0 0
        %1077 = vmatpush.bf16.msra.mxu0 %v1068
        %1078 = vmatmul.bf16.gmra.mxu0 %v1020
        %v1079 = vpop.f32.mrf.mxu0
        %v1080 = vadd.f32 0.0, %v1079
        %v1081 = vpop.f32.mrf.mxu0
        %v1082 = vadd.f32 0.0, %v1081
        %1083 = vmatmul.bf16.gmra.mxu0 %v1023
        %v1084 = vpop.f32.mrf.mxu0
        %v1085 = vadd.f32 0.0, %v1084
        %v1086 = vpop.f32.mrf.mxu0
        %v1087 = vadd.f32 0.0, %v1086
        %1088 = vmatmul.bf16.gmra.mxu0 %v1026
        %v1089 = vpop.f32.mrf.mxu0
        %v1090 = vadd.f32 0.0, %v1089
        %v1091 = vpop.f32.mrf.mxu0
        %v1092 = vadd.f32 0.0, %v1091
        %1093 = vmatmul.bf16.gmra.mxu0 %v1029
        %v1094 = vpop.f32.mrf.mxu0
        %v1095 = vadd.f32 0.0, %v1094
        %v1096 = vpop.f32.mrf.mxu0
        %v1097 = vadd.f32 0.0, %v1096
        %1098 = vmatmul.bf16.gmra.mxu0 %v1032
        %v1099 = vpop.f32.mrf.mxu0
        %v1100 = vadd.f32 0.0, %v1099
        %v1101 = vpop.f32.mrf.mxu0
        %v1102 = vadd.f32 0.0, %v1101
        %1103 = vmatmul.bf16.gmra.mxu0 %v1035
        %v1104 = vpop.f32.mrf.mxu0
        %v1105 = vadd.f32 0.0, %v1104
        %v1106 = vpop.f32.mrf.mxu0
        %v1107 = vadd.f32 0.0, %v1106
        %1108 = vmatmul.bf16.gmra.mxu0 %v1038
        %v1109 = vpop.f32.mrf.mxu0
        %v1110 = vadd.f32 0.0, %v1109
        %v1111 = vpop.f32.mrf.mxu0
        %v1112 = vadd.f32 0.0, %v1111
        %1113 = vmatmul.bf16.gmra.mxu0 %v1041
        %v1114 = vpop.f32.mrf.mxu0
        %v1115 = vadd.f32 0.0, %v1114
        %v1116 = vpop.f32.mrf.mxu0
        %v1117 = vadd.f32 0.0, %v1116
        %1118 = vmatmul.bf16.gmra.mxu0 %v1044
        %v1119 = vpop.f32.mrf.mxu0
        %v1120 = vadd.f32 0.0, %v1119
        %v1121 = vpop.f32.mrf.mxu0
        %v1122 = vadd.f32 0.0, %v1121
        %1123 = vmatmul.bf16.gmra.mxu0 %v1047
        %v1124 = vpop.f32.mrf.mxu0
        %v1125 = vadd.f32 0.0, %v1124
        %v1126 = vpop.f32.mrf.mxu0
        %v1127 = vadd.f32 0.0, %v1126
        %1128 = vmatmul.bf16.gmra.mxu0 %v1050
        %v1129 = vpop.f32.mrf.mxu0
        %v1130 = vadd.f32 0.0, %v1129
        %v1131 = vpop.f32.mrf.mxu0
        %v1132 = vadd.f32 0.0, %v1131
        %1133 = vmatmul.bf16.gmra.mxu0 %v1053
        %v1134 = vpop.f32.mrf.mxu0
        %v1135 = vadd.f32 0.0, %v1134
        %v1136 = vpop.f32.mrf.mxu0
        %v1137 = vadd.f32 0.0, %v1136
        %1138 = vmatmul.bf16.gmra.mxu0 %v1056
        %v1139 = vpop.f32.mrf.mxu0
        %v1140 = vadd.f32 0.0, %v1139
        %v1141 = vpop.f32.mrf.mxu0
        %v1142 = vadd.f32 0.0, %v1141
        %1143 = vmatmul.bf16.gmra.mxu0 %v1059
        %v1144 = vpop.f32.mrf.mxu0
        %v1145 = vadd.f32 0.0, %v1144
        %v1146 = vpop.f32.mrf.mxu0
        %v1147 = vadd.f32 0.0, %v1146
        %1148 = vmatmul.bf16.gmra.mxu0 %v1062
        %v1149 = vpop.f32.mrf.mxu0
        %v1150 = vadd.f32 0.0, %v1149
        %v1151 = vpop.f32.mrf.mxu0
        %v1152 = vadd.f32 0.0, %v1151
        %1153 = vmatmul.bf16.gmra.mxu0 %v1065
        %v1154 = vpop.f32.mrf.mxu0
        %v1155 = vadd.f32 0.0, %v1154
        %v1156 = vpop.f32.mrf.mxu0
        %v1157 = vadd.f32 0.0, %v1156
        %1158 = vdwg.mxu0
        %v1159 = vadd.f32 %v550, %v1080
        %v1160 = vadd.f32 %v551, %v1082
        %v1161 = vadd.f32 %v552, %v1085
        %v1162 = vadd.f32 %v553, %v1087
        %v1163 = vadd.f32 %v554, %v1090
        %v1164 = vadd.f32 %v555, %v1092
        %v1165 = vadd.f32 %v556, %v1095
        %v1166 = vadd.f32 %v557, %v1097
        %v1167 = vadd.f32 %v558, %v1100
        %v1168 = vadd.f32 %v559, %v1102
        %v1169 = vadd.f32 %v560, %v1105
        %v1170 = vadd.f32 %v561, %v1107
        %v1171 = vadd.f32 %v562, %v1110
        %v1172 = vadd.f32 %v563, %v1112
        %v1173 = vadd.f32 %v564, %v1115
        %v1174 = vadd.f32 %v565, %v1117
        %v1175 = vadd.f32 %v566, %v1120
        %v1176 = vadd.f32 %v567, %v1122
        %v1177 = vadd.f32 %v568, %v1125
        %v1178 = vadd.f32 %v569, %v1127
        %v1179 = vadd.f32 %v570, %v1130
        %v1180 = vadd.f32 %v571, %v1132
        %v1181 = vadd.f32 %v572, %v1135
        %v1182 = vadd.f32 %v573, %v1137
        %v1183 = vadd.f32 %v574, %v1140
        %v1184 = vadd.f32 %v575, %v1142
        %v1185 = vadd.f32 %v576, %v1145
        %v1186 = vadd.f32 %v577, %v1147
        %v1187 = vadd.f32 %v578, %v1150
        %v1188 = vadd.f32 %v579, %v1152
        %v1189 = vadd.f32 %v580, %v1155
        %v1190 = vadd.f32 %v581, %v1157
        %vm1207 = vcmask 1042432
        %vm1208 = vcmask 1046532
        %vm1209 = vmor %vm1207, %vm1208
        %v1210 = vrot.slane %v269, 5
        %v1211 = vrot.slane %v1210, 4
        %v1212 = vrot.slane %v270, 5
        %v1213 = vsel %vm1209, %v1211, %v1212
        %v1214 = vrot.slane %v1212, 4
        %v1215 = vrot.slane %v271, 5
        %v1216 = vsel %vm1209, %v1214, %v1215
        %v1217 = vrot.slane %v272, 5
        %v1218 = vrot.slane %v1217, 4
        %v1219 = vrot.slane %v273, 5
        %v1220 = vsel %vm1209, %v1218, %v1219
        %v1221 = vrot.slane %v1219, 4
        %v1222 = vrot.slane %v274, 5
        %v1223 = vsel %vm1209, %v1221, %v1222
        %v1224 = vrot.slane %v275, 5
        %v1225 = vrot.slane %v1224, 4
        %v1226 = vrot.slane %v276, 5
        %v1227 = vsel %vm1209, %v1225, %v1226
        %v1228 = vrot.slane %v1226, 4
        %v1229 = vrot.slane %v277, 5
        %v1230 = vsel %vm1209, %v1228, %v1229
        %v1231 = vrot.slane %v278, 5
        %v1232 = vrot.slane %v1231, 4
        %v1233 = vrot.slane %v279, 5
        %v1234 = vsel %vm1209, %v1232, %v1233
        %v1235 = vrot.slane %v1233, 4
        %v1236 = vrot.slane %v280, 5
        %v1237 = vsel %vm1209, %v1235, %v1236
        %v1238 = vrot.slane %v281, 5
        %v1239 = vrot.slane %v1238, 4
        %v1240 = vrot.slane %v282, 5
        %v1241 = vsel %vm1209, %v1239, %v1240
        %v1242 = vrot.slane %v1240, 4
        %v1243 = vrot.slane %v283, 5
        %v1244 = vsel %vm1209, %v1242, %v1243
        %v1245 = vrot.slane %v284, 5
        %v1246 = vrot.slane %v1245, 4
        %v1247 = vrot.slane %v285, 5
        %v1248 = vsel %vm1209, %v1246, %v1247
        %v1249 = vrot.slane %v1247, 4
        %v1250 = vrot.slane %v286, 5
        %v1251 = vsel %vm1209, %v1249, %v1250
        %v1252 = vrot.slane %v287, 5
        %v1253 = vrot.slane %v1252, 4
        %v1254 = vrot.slane %v288, 5
        %v1255 = vsel %vm1209, %v1253, %v1254
        %v1256 = vrot.slane %v1254, 4
        %v1257 = vrot.slane %v289, 5
        %v1258 = vsel %vm1209, %v1256, %v1257
        %v1259 = vrot.slane %v290, 5
        %v1260 = vrot.slane %v1259, 4
        %v1261 = vrot.slane %v291, 5
        %v1262 = vsel %vm1209, %v1260, %v1261
        %v1263 = vrot.slane %v1261, 4
        %v1264 = vrot.slane %v292, 5
        %v1265 = vsel %vm1209, %v1263, %v1264
        %v1266 = vrot.slane %v293, 5
        %v1267 = vrot.slane %v1266, 4
        %v1268 = vrot.slane %v294, 5
        %v1269 = vsel %vm1209, %v1267, %v1268
        %v1270 = vrot.slane %v1268, 4
        %v1271 = vrot.slane %v295, 5
        %v1272 = vsel %vm1209, %v1270, %v1271
        %v1273 = vrot.slane %v296, 5
        %v1274 = vrot.slane %v1273, 4
        %v1275 = vrot.slane %v297, 5
        %v1276 = vsel %vm1209, %v1274, %v1275
        %v1277 = vrot.slane %v1275, 4
        %v1278 = vrot.slane %v298, 5
        %v1279 = vsel %vm1209, %v1277, %v1278
        %v1280 = vrot.slane %v299, 5
        %v1281 = vrot.slane %v1280, 4
        %v1282 = vrot.slane %v300, 5
        %v1283 = vsel %vm1209, %v1281, %v1282
        %v1284 = vrot.slane %v1282, 4
        %v1285 = vrot.slane %v301, 5
        %v1286 = vsel %vm1209, %v1284, %v1285
        %v1287 = vrot.slane %v302, 5
        %v1288 = vrot.slane %v1287, 4
        %v1289 = vrot.slane %v303, 5
        %v1290 = vsel %vm1209, %v1288, %v1289
        %v1291 = vrot.slane %v1289, 4
        %v1292 = vrot.slane %v304, 5
        %v1293 = vsel %vm1209, %v1291, %v1292
        %v1294 = vrot.slane %v305, 5
        %v1295 = vrot.slane %v1294, 4
        %v1296 = vrot.slane %v306, 5
        %v1297 = vsel %vm1209, %v1295, %v1296
        %v1298 = vrot.slane %v1296, 4
        %v1299 = vrot.slane %v307, 5
        %v1300 = vsel %vm1209, %v1298, %v1299
        %v1301 = vrot.slane %v308, 5
        %v1302 = vrot.slane %v1301, 4
        %v1303 = vrot.slane %v309, 5
        %v1304 = vsel %vm1209, %v1302, %v1303
        %v1305 = vrot.slane %v1303, 4
        %v1306 = vrot.slane %v310, 5
        %v1307 = vsel %vm1209, %v1305, %v1306
        %v1308 = vrot.slane %v311, 5
        %v1309 = vrot.slane %v1308, 4
        %v1310 = vrot.slane %v312, 5
        %v1311 = vsel %vm1209, %v1309, %v1310
        %v1312 = vrot.slane %v1310, 4
        %v1313 = vrot.slane %v313, 5
        %v1314 = vsel %vm1209, %v1312, %v1313
        %v1315 = vrot.slane %v314, 5
        %v1316 = vrot.slane %v1315, 4
        %v1317 = vrot.slane %v315, 5
        %v1318 = vsel %vm1209, %v1316, %v1317
        %v1319 = vrot.slane %v1317, 4
        %v1320 = vrot.slane %v316, 5
        %v1321 = vsel %vm1209, %v1319, %v1320
        %s1322 = scalar_lea.vmem %s210, 4
        %v1323 = vld [vmem:[%s1322] sm:$0x3]
        %v1324 = vunpack.c.l.b16 %v1213
        %v1325 = vunpack.c.l.b16 %v1216
        %v1326 = vunpack.c.l.b16 %v1220
        %v1327 = vunpack.c.l.b16 %v1223
        %v1328 = vunpack.c.l.b16 %v1227
        %v1329 = vunpack.c.l.b16 %v1230
        %v1330 = vunpack.c.l.b16 %v1234
        %v1331 = vunpack.c.l.b16 %v1237
        %v1332 = vunpack.c.l.b16 %v1241
        %v1333 = vunpack.c.l.b16 %v1244
        %v1334 = vunpack.c.l.b16 %v1248
        %v1335 = vunpack.c.l.b16 %v1251
        %v1336 = vunpack.c.l.b16 %v1255
        %v1337 = vunpack.c.l.b16 %v1258
        %v1338 = vunpack.c.l.b16 %v1262
        %v1339 = vunpack.c.l.b16 %v1265
        %v1340 = vunpack.c.l.b16 %v1269
        %v1341 = vunpack.c.l.b16 %v1272
        %v1342 = vunpack.c.l.b16 %v1276
        %v1343 = vunpack.c.l.b16 %v1279
        %v1344 = vunpack.c.l.b16 %v1283
        %v1345 = vunpack.c.l.b16 %v1286
        %v1346 = vunpack.c.l.b16 %v1290
        %v1347 = vunpack.c.l.b16 %v1293
        %v1348 = vunpack.c.l.b16 %v1297
        %v1349 = vunpack.c.l.b16 %v1300
        %v1350 = vunpack.c.l.b16 %v1304
        %v1351 = vunpack.c.l.b16 %v1307
        %v1352 = vunpack.c.l.b16 %v1311
        %v1353 = vunpack.c.l.b16 %v1314
        %v1354 = vunpack.c.l.b16 %v1318
        %v1355 = vunpack.c.l.b16 %v1321
        %v1356 = vpack.c.b16 %v1325, %v1324
        %v1357 = vpack.c.b16 %v1327, %v1326
        %v1358 = vpack.c.b16 %v1329, %v1328
        %v1359 = vpack.c.b16 %v1331, %v1330
        %v1360 = vpack.c.b16 %v1333, %v1332
        %v1361 = vpack.c.b16 %v1335, %v1334
        %v1362 = vpack.c.b16 %v1337, %v1336
        %v1363 = vpack.c.b16 %v1339, %v1338
        %v1364 = vpack.c.b16 %v1341, %v1340
        %v1365 = vpack.c.b16 %v1343, %v1342
        %v1366 = vpack.c.b16 %v1345, %v1344
        %v1367 = vpack.c.b16 %v1347, %v1346
        %v1368 = vpack.c.b16 %v1349, %v1348
        %v1369 = vpack.c.b16 %v1351, %v1350
        %v1370 = vpack.c.b16 %v1353, %v1352
        %v1371 = vpack.c.b16 %v1355, %v1354
        %v1373 = vsel %vm408, %v1356, 0
        %v1376 = vsel %vm408, %v1357, 0
        %v1379 = vsel %vm408, %v1358, 0
        %v1382 = vsel %vm408, %v1359, 0
        %v1385 = vsel %vm408, %v1360, 0
        %v1388 = vsel %vm408, %v1361, 0
        %v1391 = vsel %vm408, %v1362, 0
        %v1394 = vsel %vm408, %v1363, 0
        %v1397 = vsel %vm408, %v1364, 0
        %v1400 = vsel %vm408, %v1365, 0
        %v1403 = vsel %vm408, %v1366, 0
        %v1406 = vsel %vm408, %v1367, 0
        %v1409 = vsel %vm408, %v1368, 0
        %v1412 = vsel %vm408, %v1369, 0
        %v1415 = vsel %vm408, %v1370, 0
        %v1418 = vsel %vm408, %v1371, 0
        %v1421 = vsel %vm457, %v1323, 0
        %1423 = vmatpush.bf16.msra.mxu0 0
        %1424 = vmatpush.bf16.msra.mxu0 0
        %1425 = vmatpush.bf16.msra.mxu0 0
        %1426 = vmatpush.bf16.msra.mxu0 0
        %1427 = vmatpush.bf16.msra.mxu0 0
        %1428 = vmatpush.bf16.msra.mxu0 0
        %1429 = vmatpush.bf16.msra.mxu0 0
        %1430 = vmatpush.bf16.msra.mxu0 %v1421
        %1431 = vmatmul.bf16.gmra.mxu0 %v1373
        %v1432 = vpop.f32.mrf.mxu0
        %v1433 = vadd.f32 0.0, %v1432
        %v1434 = vpop.f32.mrf.mxu0
        %v1435 = vadd.f32 0.0, %v1434
        %1436 = vmatmul.bf16.gmra.mxu0 %v1376
        %v1437 = vpop.f32.mrf.mxu0
        %v1438 = vadd.f32 0.0, %v1437
        %v1439 = vpop.f32.mrf.mxu0
        %v1440 = vadd.f32 0.0, %v1439
        %1441 = vmatmul.bf16.gmra.mxu0 %v1379
        %v1442 = vpop.f32.mrf.mxu0
        %v1443 = vadd.f32 0.0, %v1442
        %v1444 = vpop.f32.mrf.mxu0
        %v1445 = vadd.f32 0.0, %v1444
        %1446 = vmatmul.bf16.gmra.mxu0 %v1382
        %v1447 = vpop.f32.mrf.mxu0
        %v1448 = vadd.f32 0.0, %v1447
        %v1449 = vpop.f32.mrf.mxu0
        %v1450 = vadd.f32 0.0, %v1449
        %1451 = vmatmul.bf16.gmra.mxu0 %v1385
        %v1452 = vpop.f32.mrf.mxu0
        %v1453 = vadd.f32 0.0, %v1452
        %v1454 = vpop.f32.mrf.mxu0
        %v1455 = vadd.f32 0.0, %v1454
        %1456 = vmatmul.bf16.gmra.mxu0 %v1388
        %v1457 = vpop.f32.mrf.mxu0
        %v1458 = vadd.f32 0.0, %v1457
        %v1459 = vpop.f32.mrf.mxu0
        %v1460 = vadd.f32 0.0, %v1459
        %1461 = vmatmul.bf16.gmra.mxu0 %v1391
        %v1462 = vpop.f32.mrf.mxu0
        %v1463 = vadd.f32 0.0, %v1462
        %v1464 = vpop.f32.mrf.mxu0
        %v1465 = vadd.f32 0.0, %v1464
        %1466 = vmatmul.bf16.gmra.mxu0 %v1394
        %v1467 = vpop.f32.mrf.mxu0
        %v1468 = vadd.f32 0.0, %v1467
        %v1469 = vpop.f32.mrf.mxu0
        %v1470 = vadd.f32 0.0, %v1469
        %1471 = vmatmul.bf16.gmra.mxu0 %v1397
        %v1472 = vpop.f32.mrf.mxu0
        %v1473 = vadd.f32 0.0, %v1472
        %v1474 = vpop.f32.mrf.mxu0
        %v1475 = vadd.f32 0.0, %v1474
        %1476 = vmatmul.bf16.gmra.mxu0 %v1400
        %v1477 = vpop.f32.mrf.mxu0
        %v1478 = vadd.f32 0.0, %v1477
        %v1479 = vpop.f32.mrf.mxu0
        %v1480 = vadd.f32 0.0, %v1479
        %1481 = vmatmul.bf16.gmra.mxu0 %v1403
        %v1482 = vpop.f32.mrf.mxu0
        %v1483 = vadd.f32 0.0, %v1482
        %v1484 = vpop.f32.mrf.mxu0
        %v1485 = vadd.f32 0.0, %v1484
        %1486 = vmatmul.bf16.gmra.mxu0 %v1406
        %v1487 = vpop.f32.mrf.mxu0
        %v1488 = vadd.f32 0.0, %v1487
        %v1489 = vpop.f32.mrf.mxu0
        %v1490 = vadd.f32 0.0, %v1489
        %1491 = vmatmul.bf16.gmra.mxu0 %v1409
        %v1492 = vpop.f32.mrf.mxu0
        %v1493 = vadd.f32 0.0, %v1492
        %v1494 = vpop.f32.mrf.mxu0
        %v1495 = vadd.f32 0.0, %v1494
        %1496 = vmatmul.bf16.gmra.mxu0 %v1412
        %v1497 = vpop.f32.mrf.mxu0
        %v1498 = vadd.f32 0.0, %v1497
        %v1499 = vpop.f32.mrf.mxu0
        %v1500 = vadd.f32 0.0, %v1499
        %1501 = vmatmul.bf16.gmra.mxu0 %v1415
        %v1502 = vpop.f32.mrf.mxu0
        %v1503 = vadd.f32 0.0, %v1502
        %v1504 = vpop.f32.mrf.mxu0
        %v1505 = vadd.f32 0.0, %v1504
        %1506 = vmatmul.bf16.gmra.mxu0 %v1418
        %v1507 = vpop.f32.mrf.mxu0
        %v1508 = vadd.f32 0.0, %v1507
        %v1509 = vpop.f32.mrf.mxu0
        %v1510 = vadd.f32 0.0, %v1509
        %1511 = vdwg.mxu0
        %v1512 = vadd.f32 %v1159, %v1433
        %v1513 = vadd.f32 %v1160, %v1435
        %v1514 = vadd.f32 %v1161, %v1438
        %v1515 = vadd.f32 %v1162, %v1440
        %v1516 = vadd.f32 %v1163, %v1443
        %v1517 = vadd.f32 %v1164, %v1445
        %v1518 = vadd.f32 %v1165, %v1448
        %v1519 = vadd.f32 %v1166, %v1450
        %v1520 = vadd.f32 %v1167, %v1453
        %v1521 = vadd.f32 %v1168, %v1455
        %v1522 = vadd.f32 %v1169, %v1458
        %v1523 = vadd.f32 %v1170, %v1460
        %v1524 = vadd.f32 %v1171, %v1463
        %v1525 = vadd.f32 %v1172, %v1465
        %v1526 = vadd.f32 %v1173, %v1468
        %v1527 = vadd.f32 %v1174, %v1470
        %v1528 = vadd.f32 %v1175, %v1473
        %v1529 = vadd.f32 %v1176, %v1475
        %v1530 = vadd.f32 %v1177, %v1478
        %v1531 = vadd.f32 %v1178, %v1480
        %v1532 = vadd.f32 %v1179, %v1483
        %v1533 = vadd.f32 %v1180, %v1485
        %v1534 = vadd.f32 %v1181, %v1488
        %v1535 = vadd.f32 %v1182, %v1490
        %v1536 = vadd.f32 %v1183, %v1493
        %v1537 = vadd.f32 %v1184, %v1495
        %v1538 = vadd.f32 %v1185, %v1498
        %v1539 = vadd.f32 %v1186, %v1500
        %v1540 = vadd.f32 %v1187, %v1503
        %v1541 = vadd.f32 %v1188, %v1505
        %v1542 = vadd.f32 %v1189, %v1508
        %v1543 = vadd.f32 %v1190, %v1510
        %s1544 = scalar_lea.vmem %s210, 6
        %v1545 = vld [vmem:[%s1544] sm:$0x3]
        %v1548 = vunpack.c.l.b16 %v317
        %v1549 = vunpack.c.l.b16 %v318
        %v1550 = vpack.c.b16 %v1549, %v1548
        %v1552 = vsel %vm408, %v1550, 0
        %v1555 = vsel %vm457, %v1545, 0
        %1557 = vmatpush.bf16.msra.mxu0 0
        %1558 = vmatpush.bf16.msra.mxu0 0
        %1559 = vmatpush.bf16.msra.mxu0 0
        %1560 = vmatpush.bf16.msra.mxu0 0
        %1561 = vmatpush.bf16.msra.mxu0 0
        %1562 = vmatpush.bf16.msra.mxu0 0
        %1563 = vmatpush.bf16.msra.mxu0 0
        %1564 = vmatpush.bf16.msra.mxu0 %v1555
        %1565 = vmatmul.bf16.gmra.mxu0 %v413
        %v1566 = vpop.f32.mrf.mxu0
        %v1567 = vadd.f32 0.0, %v1566
        %v1568 = vpop.f32.mrf.mxu0
        %v1569 = vadd.f32 0.0, %v1568
        %1570 = vmatmul.bf16.gmra.mxu0 %v416
        %v1571 = vpop.f32.mrf.mxu0
        %v1572 = vadd.f32 0.0, %v1571
        %v1573 = vpop.f32.mrf.mxu0
        %v1574 = vadd.f32 0.0, %v1573
        %1575 = vmatmul.bf16.gmra.mxu0 %v419
        %v1576 = vpop.f32.mrf.mxu0
        %v1577 = vadd.f32 0.0, %v1576
        %v1578 = vpop.f32.mrf.mxu0
        %v1579 = vadd.f32 0.0, %v1578
        %1580 = vmatmul.bf16.gmra.mxu0 %v422
        %v1581 = vpop.f32.mrf.mxu0
        %v1582 = vadd.f32 0.0, %v1581
        %v1583 = vpop.f32.mrf.mxu0
        %v1584 = vadd.f32 0.0, %v1583
        %1585 = vmatmul.bf16.gmra.mxu0 %v425
        %v1586 = vpop.f32.mrf.mxu0
        %v1587 = vadd.f32 0.0, %v1586
        %v1588 = vpop.f32.mrf.mxu0
        %v1589 = vadd.f32 0.0, %v1588
        %1590 = vmatmul.bf16.gmra.mxu0 %v428
        %v1591 = vpop.f32.mrf.mxu0
        %v1592 = vadd.f32 0.0, %v1591
        %v1593 = vpop.f32.mrf.mxu0
        %v1594 = vadd.f32 0.0, %v1593
        %1595 = vmatmul.bf16.gmra.mxu0 %v431
        %v1596 = vpop.f32.mrf.mxu0
        %v1597 = vadd.f32 0.0, %v1596
        %v1598 = vpop.f32.mrf.mxu0
        %v1599 = vadd.f32 0.0, %v1598
        %1600 = vmatmul.bf16.gmra.mxu0 %v434
        %v1601 = vpop.f32.mrf.mxu0
        %v1602 = vadd.f32 0.0, %v1601
        %v1603 = vpop.f32.mrf.mxu0
        %v1604 = vadd.f32 0.0, %v1603
        %1605 = vmatmul.bf16.gmra.mxu0 %v437
        %v1606 = vpop.f32.mrf.mxu0
        %v1607 = vadd.f32 0.0, %v1606
        %v1608 = vpop.f32.mrf.mxu0
        %v1609 = vadd.f32 0.0, %v1608
        %1610 = vmatmul.bf16.gmra.mxu0 %v440
        %v1611 = vpop.f32.mrf.mxu0
        %v1612 = vadd.f32 0.0, %v1611
        %v1613 = vpop.f32.mrf.mxu0
        %v1614 = vadd.f32 0.0, %v1613
        %1615 = vmatmul.bf16.gmra.mxu0 %v443
        %v1616 = vpop.f32.mrf.mxu0
        %v1617 = vadd.f32 0.0, %v1616
        %v1618 = vpop.f32.mrf.mxu0
        %v1619 = vadd.f32 0.0, %v1618
        %1620 = vmatmul.bf16.gmra.mxu0 %v446
        %v1621 = vpop.f32.mrf.mxu0
        %v1622 = vadd.f32 0.0, %v1621
        %v1623 = vpop.f32.mrf.mxu0
        %v1624 = vadd.f32 0.0, %v1623
        %1625 = vmatmul.bf16.gmra.mxu0 %v449
        %v1626 = vpop.f32.mrf.mxu0
        %v1627 = vadd.f32 0.0, %v1626
        %v1628 = vpop.f32.mrf.mxu0
        %v1629 = vadd.f32 0.0, %v1628
        %1630 = vmatmul.bf16.gmra.mxu0 %v452
        %v1631 = vpop.f32.mrf.mxu0
        %v1632 = vadd.f32 0.0, %v1631
        %v1633 = vpop.f32.mrf.mxu0
        %v1634 = vadd.f32 0.0, %v1633
        %1635 = vmatmul.bf16.gmra.mxu0 %v455
        %v1636 = vpop.f32.mrf.mxu0
        %v1637 = vadd.f32 0.0, %v1636
        %v1638 = vpop.f32.mrf.mxu0
        %v1639 = vadd.f32 0.0, %v1638
        %1640 = vmatmul.bf16.gmra.mxu0 %v1552
        %v1641 = vpop.f32.mrf.mxu0
        %v1642 = vadd.f32 0.0, %v1641
        %v1643 = vpop.f32.mrf.mxu0
        %v1644 = vadd.f32 0.0, %v1643
        %1645 = vdwg.mxu0
        %v1646 = vadd.f32 %v1512, %v1567
        %v1647 = vadd.f32 %v1513, %v1569
        %v1648 = vadd.f32 %v1514, %v1572
        %v1649 = vadd.f32 %v1515, %v1574
        %v1650 = vadd.f32 %v1516, %v1577
        %v1651 = vadd.f32 %v1517, %v1579
        %v1652 = vadd.f32 %v1518, %v1582
        %v1653 = vadd.f32 %v1519, %v1584
        %v1654 = vadd.f32 %v1520, %v1587
        %v1655 = vadd.f32 %v1521, %v1589
        %v1656 = vadd.f32 %v1522, %v1592
        %v1657 = vadd.f32 %v1523, %v1594
        %v1658 = vadd.f32 %v1524, %v1597
        %v1659 = vadd.f32 %v1525, %v1599
        %v1660 = vadd.f32 %v1526, %v1602
        %v1661 = vadd.f32 %v1527, %v1604
        %v1662 = vadd.f32 %v1528, %v1607
        %v1663 = vadd.f32 %v1529, %v1609
        %v1664 = vadd.f32 %v1530, %v1612
        %v1665 = vadd.f32 %v1531, %v1614
        %v1666 = vadd.f32 %v1532, %v1617
        %v1667 = vadd.f32 %v1533, %v1619
        %v1668 = vadd.f32 %v1534, %v1622
        %v1669 = vadd.f32 %v1535, %v1624
        %v1670 = vadd.f32 %v1536, %v1627
        %v1671 = vadd.f32 %v1537, %v1629
        %v1672 = vadd.f32 %v1538, %v1632
        %v1673 = vadd.f32 %v1539, %v1634
        %v1674 = vadd.f32 %v1540, %v1637
        %v1675 = vadd.f32 %v1541, %v1639
        %v1676 = vadd.f32 %v1542, %v1642
        %v1677 = vadd.f32 %v1543, %v1644
        %v1679 = vshrl.u32 %v317, 16
        %v1681 = vrot.slane %v1679, 4
        %v1682 = vshll.u32 %v317, 16
        %v1684 = vrot.slane %v1682, 5
        %v1685 = vor.u32 %v1681, %v1684
        %v1686 = vrot.slane %v1685, 4
        %v1688 = vshll.u32 %v318, 16
        %v1690 = vrot.slane %v1688, 5
        %v1691 = vsel %vm584, %v1686, %v1690
        %v1692 = vshrl.u32 %v318, 16
        %v1694 = vrot.slane %v1692, 4
        %v1695 = vor.u32 %v1694, %v1690
        %v1696 = vrot.slane %v1695, 4
        %v1698 = vshll.u32 %v319, 16
        %v1700 = vrot.slane %v1698, 5
        %v1701 = vsel %vm584, %v1696, %v1700
        %s1702 = scalar_lea.vmem %s210, 8
        %v1703 = vld [vmem:[%s1702] sm:$0x3]
        %v1704 = vunpack.c.l.b16 %v1691
        %v1705 = vunpack.c.l.b16 %v1701
        %v1706 = vpack.c.b16 %v1705, %v1704
        %v1708 = vsel %vm408, %v1706, 0
        %v1711 = vsel %vm457, %v1703, 0
        %1713 = vmatpush.bf16.msra.mxu0 0
        %1714 = vmatpush.bf16.msra.mxu0 0
        %1715 = vmatpush.bf16.msra.mxu0 0
        %1716 = vmatpush.bf16.msra.mxu0 0
        %1717 = vmatpush.bf16.msra.mxu0 0
        %1718 = vmatpush.bf16.msra.mxu0 0
        %1719 = vmatpush.bf16.msra.mxu0 0
        %1720 = vmatpush.bf16.msra.mxu0 %v1711
        %1721 = vmatmul.bf16.gmra.mxu0 %v1023
        %v1722 = vpop.f32.mrf.mxu0
        %v1723 = vadd.f32 0.0, %v1722
        %v1724 = vpop.f32.mrf.mxu0
        %v1725 = vadd.f32 0.0, %v1724
        %1726 = vmatmul.bf16.gmra.mxu0 %v1026
        %v1727 = vpop.f32.mrf.mxu0
        %v1728 = vadd.f32 0.0, %v1727
        %v1729 = vpop.f32.mrf.mxu0
        %v1730 = vadd.f32 0.0, %v1729
        %1731 = vmatmul.bf16.gmra.mxu0 %v1029
        %v1732 = vpop.f32.mrf.mxu0
        %v1733 = vadd.f32 0.0, %v1732
        %v1734 = vpop.f32.mrf.mxu0
        %v1735 = vadd.f32 0.0, %v1734
        %1736 = vmatmul.bf16.gmra.mxu0 %v1032
        %v1737 = vpop.f32.mrf.mxu0
        %v1738 = vadd.f32 0.0, %v1737
        %v1739 = vpop.f32.mrf.mxu0
        %v1740 = vadd.f32 0.0, %v1739
        %1741 = vmatmul.bf16.gmra.mxu0 %v1035
        %v1742 = vpop.f32.mrf.mxu0
        %v1743 = vadd.f32 0.0, %v1742
        %v1744 = vpop.f32.mrf.mxu0
        %v1745 = vadd.f32 0.0, %v1744
        %1746 = vmatmul.bf16.gmra.mxu0 %v1038
        %v1747 = vpop.f32.mrf.mxu0
        %v1748 = vadd.f32 0.0, %v1747
        %v1749 = vpop.f32.mrf.mxu0
        %v1750 = vadd.f32 0.0, %v1749
        %1751 = vmatmul.bf16.gmra.mxu0 %v1041
        %v1752 = vpop.f32.mrf.mxu0
        %v1753 = vadd.f32 0.0, %v1752
        %v1754 = vpop.f32.mrf.mxu0
        %v1755 = vadd.f32 0.0, %v1754
        %1756 = vmatmul.bf16.gmra.mxu0 %v1044
        %v1757 = vpop.f32.mrf.mxu0
        %v1758 = vadd.f32 0.0, %v1757
        %v1759 = vpop.f32.mrf.mxu0
        %v1760 = vadd.f32 0.0, %v1759
        %1761 = vmatmul.bf16.gmra.mxu0 %v1047
        %v1762 = vpop.f32.mrf.mxu0
        %v1763 = vadd.f32 0.0, %v1762
        %v1764 = vpop.f32.mrf.mxu0
        %v1765 = vadd.f32 0.0, %v1764
        %1766 = vmatmul.bf16.gmra.mxu0 %v1050
        %v1767 = vpop.f32.mrf.mxu0
        %v1768 = vadd.f32 0.0, %v1767
        %v1769 = vpop.f32.mrf.mxu0
        %v1770 = vadd.f32 0.0, %v1769
        %1771 = vmatmul.bf16.gmra.mxu0 %v1053
        %v1772 = vpop.f32.mrf.mxu0
        %v1773 = vadd.f32 0.0, %v1772
        %v1774 = vpop.f32.mrf.mxu0
        %v1775 = vadd.f32 0.0, %v1774
        %1776 = vmatmul.bf16.gmra.mxu0 %v1056
        %v1777 = vpop.f32.mrf.mxu0
        %v1778 = vadd.f32 0.0, %v1777
        %v1779 = vpop.f32.mrf.mxu0
        %v1780 = vadd.f32 0.0, %v1779
        %1781 = vmatmul.bf16.gmra.mxu0 %v1059
        %v1782 = vpop.f32.mrf.mxu0
        %v1783 = vadd.f32 0.0, %v1782
        %v1784 = vpop.f32.mrf.mxu0
        %v1785 = vadd.f32 0.0, %v1784
        %1786 = vmatmul.bf16.gmra.mxu0 %v1062
        %v1787 = vpop.f32.mrf.mxu0
        %v1788 = vadd.f32 0.0, %v1787
        %v1789 = vpop.f32.mrf.mxu0
        %v1790 = vadd.f32 0.0, %v1789
        %1791 = vmatmul.bf16.gmra.mxu0 %v1065
        %v1792 = vpop.f32.mrf.mxu0
        %v1793 = vadd.f32 0.0, %v1792
        %v1794 = vpop.f32.mrf.mxu0
        %v1795 = vadd.f32 0.0, %v1794
        %1796 = vmatmul.bf16.gmra.mxu0 %v1708
        %v1797 = vpop.f32.mrf.mxu0
        %v1798 = vadd.f32 0.0, %v1797
        %v1799 = vpop.f32.mrf.mxu0
        %v1800 = vadd.f32 0.0, %v1799
        %1801 = vdwg.mxu0
        %v1802 = vadd.f32 %v1646, %v1723
        %v1803 = vadd.f32 %v1647, %v1725
        %v1804 = vadd.f32 %v1648, %v1728
        %v1805 = vadd.f32 %v1649, %v1730
        %v1806 = vadd.f32 %v1650, %v1733
        %v1807 = vadd.f32 %v1651, %v1735
        %v1808 = vadd.f32 %v1652, %v1738
        %v1809 = vadd.f32 %v1653, %v1740
        %v1810 = vadd.f32 %v1654, %v1743
        %v1811 = vadd.f32 %v1655, %v1745
        %v1812 = vadd.f32 %v1656, %v1748
        %v1813 = vadd.f32 %v1657, %v1750
        %v1814 = vadd.f32 %v1658, %v1753
        %v1815 = vadd.f32 %v1659, %v1755
        %v1816 = vadd.f32 %v1660, %v1758
        %v1817 = vadd.f32 %v1661, %v1760
        %v1818 = vadd.f32 %v1662, %v1763
        %v1819 = vadd.f32 %v1663, %v1765
        %v1820 = vadd.f32 %v1664, %v1768
        %v1821 = vadd.f32 %v1665, %v1770
        %v1822 = vadd.f32 %v1666, %v1773
        %v1823 = vadd.f32 %v1667, %v1775
        %v1824 = vadd.f32 %v1668, %v1778
        %v1825 = vadd.f32 %v1669, %v1780
        %v1826 = vadd.f32 %v1670, %v1783
        %v1827 = vadd.f32 %v1671, %v1785
        %v1828 = vadd.f32 %v1672, %v1788
        %v1829 = vadd.f32 %v1673, %v1790
        %v1830 = vadd.f32 %v1674, %v1793
        %v1831 = vadd.f32 %v1675, %v1795
        %v1832 = vadd.f32 %v1676, %v1798
        %v1833 = vadd.f32 %v1677, %v1800
        %v1835 = vrot.slane %v317, 5
        %v1836 = vrot.slane %v1835, 4
        %v1837 = vrot.slane %v318, 5
        %v1838 = vsel %vm1209, %v1836, %v1837
        %v1839 = vrot.slane %v1837, 4
        %v1840 = vrot.slane %v319, 5
        %v1841 = vsel %vm1209, %v1839, %v1840
        %s1842 = scalar_lea.vmem %s210, 10
        %v1843 = vld [vmem:[%s1842] sm:$0x3]
        %v1844 = vunpack.c.l.b16 %v1838
        %v1845 = vunpack.c.l.b16 %v1841
        %v1846 = vpack.c.b16 %v1845, %v1844
        %v1848 = vsel %vm408, %v1846, 0
        %v1851 = vsel %vm457, %v1843, 0
        %1853 = vmatpush.bf16.msra.mxu0 0
        %1854 = vmatpush.bf16.msra.mxu0 0
        %1855 = vmatpush.bf16.msra.mxu0 0
        %1856 = vmatpush.bf16.msra.mxu0 0
        %1857 = vmatpush.bf16.msra.mxu0 0
        %1858 = vmatpush.bf16.msra.mxu0 0
        %1859 = vmatpush.bf16.msra.mxu0 0
        %1860 = vmatpush.bf16.msra.mxu0 %v1851
        %1861 = vmatmul.bf16.gmra.mxu0 %v1376
        %v1862 = vpop.f32.mrf.mxu0
        %v1863 = vadd.f32 0.0, %v1862
        %v1864 = vpop.f32.mrf.mxu0
        %v1865 = vadd.f32 0.0, %v1864
        %1866 = vmatmul.bf16.gmra.mxu0 %v1379
        %v1867 = vpop.f32.mrf.mxu0
        %v1868 = vadd.f32 0.0, %v1867
        %v1869 = vpop.f32.mrf.mxu0
        %v1870 = vadd.f32 0.0, %v1869
        %1871 = vmatmul.bf16.gmra.mxu0 %v1382
        %v1872 = vpop.f32.mrf.mxu0
        %v1873 = vadd.f32 0.0, %v1872
        %v1874 = vpop.f32.mrf.mxu0
        %v1875 = vadd.f32 0.0, %v1874
        %1876 = vmatmul.bf16.gmra.mxu0 %v1385
        %v1877 = vpop.f32.mrf.mxu0
        %v1878 = vadd.f32 0.0, %v1877
        %v1879 = vpop.f32.mrf.mxu0
        %v1880 = vadd.f32 0.0, %v1879
        %1881 = vmatmul.bf16.gmra.mxu0 %v1388
        %v1882 = vpop.f32.mrf.mxu0
        %v1883 = vadd.f32 0.0, %v1882
        %v1884 = vpop.f32.mrf.mxu0
        %v1885 = vadd.f32 0.0, %v1884
        %1886 = vmatmul.bf16.gmra.mxu0 %v1391
        %v1887 = vpop.f32.mrf.mxu0
        %v1888 = vadd.f32 0.0, %v1887
        %v1889 = vpop.f32.mrf.mxu0
        %v1890 = vadd.f32 0.0, %v1889
        %1891 = vmatmul.bf16.gmra.mxu0 %v1394
        %v1892 = vpop.f32.mrf.mxu0
        %v1893 = vadd.f32 0.0, %v1892
        %v1894 = vpop.f32.mrf.mxu0
        %v1895 = vadd.f32 0.0, %v1894
        %1896 = vmatmul.bf16.gmra.mxu0 %v1397
        %v1897 = vpop.f32.mrf.mxu0
        %v1898 = vadd.f32 0.0, %v1897
        %v1899 = vpop.f32.mrf.mxu0
        %v1900 = vadd.f32 0.0, %v1899
        %1901 = vmatmul.bf16.gmra.mxu0 %v1400
        %v1902 = vpop.f32.mrf.mxu0
        %v1903 = vadd.f32 0.0, %v1902
        %v1904 = vpop.f32.mrf.mxu0
        %v1905 = vadd.f32 0.0, %v1904
        %1906 = vmatmul.bf16.gmra.mxu0 %v1403
        %v1907 = vpop.f32.mrf.mxu0
        %v1908 = vadd.f32 0.0, %v1907
        %v1909 = vpop.f32.mrf.mxu0
        %v1910 = vadd.f32 0.0, %v1909
        %1911 = vmatmul.bf16.gmra.mxu0 %v1406
        %v1912 = vpop.f32.mrf.mxu0
        %v1913 = vadd.f32 0.0, %v1912
        %v1914 = vpop.f32.mrf.mxu0
        %v1915 = vadd.f32 0.0, %v1914
        %1916 = vmatmul.bf16.gmra.mxu0 %v1409
        %v1917 = vpop.f32.mrf.mxu0
        %v1918 = vadd.f32 0.0, %v1917
        %v1919 = vpop.f32.mrf.mxu0
        %v1920 = vadd.f32 0.0, %v1919
        %1921 = vmatmul.bf16.gmra.mxu0 %v1412
        %v1922 = vpop.f32.mrf.mxu0
        %v1923 = vadd.f32 0.0, %v1922
        %v1924 = vpop.f32.mrf.mxu0
        %v1925 = vadd.f32 0.0, %v1924
        %1926 = vmatmul.bf16.gmra.mxu0 %v1415
        %v1927 = vpop.f32.mrf.mxu0
        %v1928 = vadd.f32 0.0, %v1927
        %v1929 = vpop.f32.mrf.mxu0
        %v1930 = vadd.f32 0.0, %v1929
        %1931 = vmatmul.bf16.gmra.mxu0 %v1418
        %v1932 = vpop.f32.mrf.mxu0
        %v1933 = vadd.f32 0.0, %v1932
        %v1934 = vpop.f32.mrf.mxu0
        %v1935 = vadd.f32 0.0, %v1934
        %1936 = vmatmul.bf16.gmra.mxu0 %v1848
        %v1937 = vpop.f32.mrf.mxu0
        %v1938 = vadd.f32 0.0, %v1937
        %v1939 = vpop.f32.mrf.mxu0
        %v1940 = vadd.f32 0.0, %v1939
        %1941 = vdwg.mxu0
        %v1942 = vadd.f32 %v1802, %v1863
        %v1943 = vadd.f32 %v1803, %v1865
        %v1944 = vadd.f32 %v1804, %v1868
        %v1945 = vadd.f32 %v1805, %v1870
        %v1946 = vadd.f32 %v1806, %v1873
        %v1947 = vadd.f32 %v1807, %v1875
        %v1948 = vadd.f32 %v1808, %v1878
        %v1949 = vadd.f32 %v1809, %v1880
        %v1950 = vadd.f32 %v1810, %v1883
        %v1951 = vadd.f32 %v1811, %v1885
        %v1952 = vadd.f32 %v1812, %v1888
        %v1953 = vadd.f32 %v1813, %v1890
        %v1954 = vadd.f32 %v1814, %v1893
        %v1955 = vadd.f32 %v1815, %v1895
        %v1956 = vadd.f32 %v1816, %v1898
        %v1957 = vadd.f32 %v1817, %v1900
        %v1958 = vadd.f32 %v1818, %v1903
        %v1959 = vadd.f32 %v1819, %v1905
        %v1960 = vadd.f32 %v1820, %v1908
        %v1961 = vadd.f32 %v1821, %v1910
        %v1962 = vadd.f32 %v1822, %v1913
        %v1963 = vadd.f32 %v1823, %v1915
        %v1964 = vadd.f32 %v1824, %v1918
        %v1965 = vadd.f32 %v1825, %v1920
        %v1966 = vadd.f32 %v1826, %v1923
        %v1967 = vadd.f32 %v1827, %v1925
        %v1968 = vadd.f32 %v1828, %v1928
        %v1969 = vadd.f32 %v1829, %v1930
        %v1970 = vadd.f32 %v1830, %v1933
        %v1971 = vadd.f32 %v1831, %v1935
        %v1972 = vadd.f32 %v1832, %v1938
        %v1973 = vadd.f32 %v1833, %v1940
        %s1974 = scalar_lea.vmem %s210, 12
        %v1975 = vld [vmem:[%s1974] sm:$0x3]
        %v1978 = vunpack.c.l.b16 %v320
        %v1979 = vunpack.c.l.b16 %v321
        %v1980 = vpack.c.b16 %v1979, %v1978
        %v1982 = vsel %vm408, %v1980, 0
        %v1985 = vsel %vm457, %v1975, 0
        %1987 = vmatpush.bf16.msra.mxu0 0
        %1988 = vmatpush.bf16.msra.mxu0 0
        %1989 = vmatpush.bf16.msra.mxu0 0
        %1990 = vmatpush.bf16.msra.mxu0 0
        %1991 = vmatpush.bf16.msra.mxu0 0
        %1992 = vmatpush.bf16.msra.mxu0 0
        %1993 = vmatpush.bf16.msra.mxu0 0
        %1994 = vmatpush.bf16.msra.mxu0 %v1985
        %1995 = vmatmul.bf16.gmra.mxu0 %v416
        %v1996 = vpop.f32.mrf.mxu0
        %v1997 = vadd.f32 0.0, %v1996
        %v1998 = vpop.f32.mrf.mxu0
        %v1999 = vadd.f32 0.0, %v1998
        %2000 = vmatmul.bf16.gmra.mxu0 %v419
        %v2001 = vpop.f32.mrf.mxu0
        %v2002 = vadd.f32 0.0, %v2001
        %v2003 = vpop.f32.mrf.mxu0
        %v2004 = vadd.f32 0.0, %v2003
        %2005 = vmatmul.bf16.gmra.mxu0 %v422
        %v2006 = vpop.f32.mrf.mxu0
        %v2007 = vadd.f32 0.0, %v2006
        %v2008 = vpop.f32.mrf.mxu0
        %v2009 = vadd.f32 0.0, %v2008
        %2010 = vmatmul.bf16.gmra.mxu0 %v425
        %v2011 = vpop.f32.mrf.mxu0
        %v2012 = vadd.f32 0.0, %v2011
        %v2013 = vpop.f32.mrf.mxu0
        %v2014 = vadd.f32 0.0, %v2013
        %2015 = vmatmul.bf16.gmra.mxu0 %v428
        %v2016 = vpop.f32.mrf.mxu0
        %v2017 = vadd.f32 0.0, %v2016
        %v2018 = vpop.f32.mrf.mxu0
        %v2019 = vadd.f32 0.0, %v2018
        %2020 = vmatmul.bf16.gmra.mxu0 %v431
        %v2021 = vpop.f32.mrf.mxu0
        %v2022 = vadd.f32 0.0, %v2021
        %v2023 = vpop.f32.mrf.mxu0
        %v2024 = vadd.f32 0.0, %v2023
        %2025 = vmatmul.bf16.gmra.mxu0 %v434
        %v2026 = vpop.f32.mrf.mxu0
        %v2027 = vadd.f32 0.0, %v2026
        %v2028 = vpop.f32.mrf.mxu0
        %v2029 = vadd.f32 0.0, %v2028
        %2030 = vmatmul.bf16.gmra.mxu0 %v437
        %v2031 = vpop.f32.mrf.mxu0
        %v2032 = vadd.f32 0.0, %v2031
        %v2033 = vpop.f32.mrf.mxu0
        %v2034 = vadd.f32 0.0, %v2033
        %2035 = vmatmul.bf16.gmra.mxu0 %v440
        %v2036 = vpop.f32.mrf.mxu0
        %v2037 = vadd.f32 0.0, %v2036
        %v2038 = vpop.f32.mrf.mxu0
        %v2039 = vadd.f32 0.0, %v2038
        %2040 = vmatmul.bf16.gmra.mxu0 %v443
        %v2041 = vpop.f32.mrf.mxu0
        %v2042 = vadd.f32 0.0, %v2041
        %v2043 = vpop.f32.mrf.mxu0
        %v2044 = vadd.f32 0.0, %v2043
        %2045 = vmatmul.bf16.gmra.mxu0 %v446
        %v2046 = vpop.f32.mrf.mxu0
        %v2047 = vadd.f32 0.0, %v2046
        %v2048 = vpop.f32.mrf.mxu0
        %v2049 = vadd.f32 0.0, %v2048
        %2050 = vmatmul.bf16.gmra.mxu0 %v449
        %v2051 = vpop.f32.mrf.mxu0
        %v2052 = vadd.f32 0.0, %v2051
        %v2053 = vpop.f32.mrf.mxu0
        %v2054 = vadd.f32 0.0, %v2053
        %2055 = vmatmul.bf16.gmra.mxu0 %v452
        %v2056 = vpop.f32.mrf.mxu0
        %v2057 = vadd.f32 0.0, %v2056
        %v2058 = vpop.f32.mrf.mxu0
        %v2059 = vadd.f32 0.0, %v2058
        %2060 = vmatmul.bf16.gmra.mxu0 %v455
        %v2061 = vpop.f32.mrf.mxu0
        %v2062 = vadd.f32 0.0, %v2061
        %v2063 = vpop.f32.mrf.mxu0
        %v2064 = vadd.f32 0.0, %v2063
        %2065 = vmatmul.bf16.gmra.mxu0 %v1552
        %v2066 = vpop.f32.mrf.mxu0
        %v2067 = vadd.f32 0.0, %v2066
        %v2068 = vpop.f32.mrf.mxu0
        %v2069 = vadd.f32 0.0, %v2068
        %2070 = vmatmul.bf16.gmra.mxu0 %v1982
        %v2071 = vpop.f32.mrf.mxu0
        %v2072 = vadd.f32 0.0, %v2071
        %v2073 = vpop.f32.mrf.mxu0
        %v2074 = vadd.f32 0.0, %v2073
        %2075 = vdwg.mxu0
        %v2076 = vadd.f32 %v1942, %v1997
        %v2077 = vadd.f32 %v1943, %v1999
        %v2078 = vadd.f32 %v1944, %v2002
        %v2079 = vadd.f32 %v1945, %v2004
        %v2080 = vadd.f32 %v1946, %v2007
        %v2081 = vadd.f32 %v1947, %v2009
        %v2082 = vadd.f32 %v1948, %v2012
        %v2083 = vadd.f32 %v1949, %v2014
        %v2084 = vadd.f32 %v1950, %v2017
        %v2085 = vadd.f32 %v1951, %v2019
        %v2086 = vadd.f32 %v1952, %v2022
        %v2087 = vadd.f32 %v1953, %v2024
        %v2088 = vadd.f32 %v1954, %v2027
        %v2089 = vadd.f32 %v1955, %v2029
        %v2090 = vadd.f32 %v1956, %v2032
        %v2091 = vadd.f32 %v1957, %v2034
        %v2092 = vadd.f32 %v1958, %v2037
        %v2093 = vadd.f32 %v1959, %v2039
        %v2094 = vadd.f32 %v1960, %v2042
        %v2095 = vadd.f32 %v1961, %v2044
        %v2096 = vadd.f32 %v1962, %v2047
        %v2097 = vadd.f32 %v1963, %v2049
        %v2098 = vadd.f32 %v1964, %v2052
        %v2099 = vadd.f32 %v1965, %v2054
        %v2100 = vadd.f32 %v1966, %v2057
        %v2101 = vadd.f32 %v1967, %v2059
        %v2102 = vadd.f32 %v1968, %v2062
        %v2103 = vadd.f32 %v1969, %v2064
        %v2104 = vadd.f32 %v1970, %v2067
        %v2105 = vadd.f32 %v1971, %v2069
        %v2106 = vadd.f32 %v1972, %v2072
        %v2107 = vadd.f32 %v1973, %v2074
        %v2109 = vshrl.u32 %v320, 16
        %v2111 = vrot.slane %v2109, 4
        %v2112 = vshll.u32 %v320, 16
        %v2114 = vrot.slane %v2112, 5
        %v2115 = vor.u32 %v2111, %v2114
        %v2116 = vrot.slane %v2115, 4
        %v2118 = vshll.u32 %v321, 16
        %v2120 = vrot.slane %v2118, 5
        %v2121 = vsel %vm584, %v2116, %v2120
        %v2122 = vshrl.u32 %v321, 16
        %v2124 = vrot.slane %v2122, 4
        %v2125 = vor.u32 %v2124, %v2120
        %v2126 = vrot.slane %v2125, 4
        %v2128 = vshll.u32 %v322, 16
        %v2130 = vrot.slane %v2128, 5
        %v2131 = vsel %vm584, %v2126, %v2130
        %s2132 = scalar_lea.vmem %s210, 14
        %v2133 = vld [vmem:[%s2132] sm:$0x3]
        %v2134 = vunpack.c.l.b16 %v2121
        %v2135 = vunpack.c.l.b16 %v2131
        %v2136 = vpack.c.b16 %v2135, %v2134
        %v2138 = vsel %vm408, %v2136, 0
        %v2141 = vsel %vm457, %v2133, 0
        %2143 = vmatpush.bf16.msra.mxu0 0
        %2144 = vmatpush.bf16.msra.mxu0 0
        %2145 = vmatpush.bf16.msra.mxu0 0
        %2146 = vmatpush.bf16.msra.mxu0 0
        %2147 = vmatpush.bf16.msra.mxu0 0
        %2148 = vmatpush.bf16.msra.mxu0 0
        %2149 = vmatpush.bf16.msra.mxu0 0
        %2150 = vmatpush.bf16.msra.mxu0 %v2141
        %2151 = vmatmul.bf16.gmra.mxu0 %v1026
        %v2152 = vpop.f32.mrf.mxu0
        %v2153 = vadd.f32 0.0, %v2152
        %v2154 = vpop.f32.mrf.mxu0
        %v2155 = vadd.f32 0.0, %v2154
        %2156 = vmatmul.bf16.gmra.mxu0 %v1029
        %v2157 = vpop.f32.mrf.mxu0
        %v2158 = vadd.f32 0.0, %v2157
        %v2159 = vpop.f32.mrf.mxu0
        %v2160 = vadd.f32 0.0, %v2159
        %2161 = vmatmul.bf16.gmra.mxu0 %v1032
        %v2162 = vpop.f32.mrf.mxu0
        %v2163 = vadd.f32 0.0, %v2162
        %v2164 = vpop.f32.mrf.mxu0
        %v2165 = vadd.f32 0.0, %v2164
        %2166 = vmatmul.bf16.gmra.mxu0 %v1035
        %v2167 = vpop.f32.mrf.mxu0
        %v2168 = vadd.f32 0.0, %v2167
        %v2169 = vpop.f32.mrf.mxu0
        %v2170 = vadd.f32 0.0, %v2169
        %2171 = vmatmul.bf16.gmra.mxu0 %v1038
        %v2172 = vpop.f32.mrf.mxu0
        %v2173 = vadd.f32 0.0, %v2172
        %v2174 = vpop.f32.mrf.mxu0
        %v2175 = vadd.f32 0.0, %v2174
        %2176 = vmatmul.bf16.gmra.mxu0 %v1041
        %v2177 = vpop.f32.mrf.mxu0
        %v2178 = vadd.f32 0.0, %v2177
        %v2179 = vpop.f32.mrf.mxu0
        %v2180 = vadd.f32 0.0, %v2179
        %2181 = vmatmul.bf16.gmra.mxu0 %v1044
        %v2182 = vpop.f32.mrf.mxu0
        %v2183 = vadd.f32 0.0, %v2182
        %v2184 = vpop.f32.mrf.mxu0
        %v2185 = vadd.f32 0.0, %v2184
        %2186 = vmatmul.bf16.gmra.mxu0 %v1047
        %v2187 = vpop.f32.mrf.mxu0
        %v2188 = vadd.f32 0.0, %v2187
        %v2189 = vpop.f32.mrf.mxu0
        %v2190 = vadd.f32 0.0, %v2189
        %2191 = vmatmul.bf16.gmra.mxu0 %v1050
        %v2192 = vpop.f32.mrf.mxu0
        %v2193 = vadd.f32 0.0, %v2192
        %v2194 = vpop.f32.mrf.mxu0
        %v2195 = vadd.f32 0.0, %v2194
        %2196 = vmatmul.bf16.gmra.mxu0 %v1053
        %v2197 = vpop.f32.mrf.mxu0
        %v2198 = vadd.f32 0.0, %v2197
        %v2199 = vpop.f32.mrf.mxu0
        %v2200 = vadd.f32 0.0, %v2199
        %2201 = vmatmul.bf16.gmra.mxu0 %v1056
        %v2202 = vpop.f32.mrf.mxu0
        %v2203 = vadd.f32 0.0, %v2202
        %v2204 = vpop.f32.mrf.mxu0
        %v2205 = vadd.f32 0.0, %v2204
        %2206 = vmatmul.bf16.gmra.mxu0 %v1059
        %v2207 = vpop.f32.mrf.mxu0
        %v2208 = vadd.f32 0.0, %v2207
        %v2209 = vpop.f32.mrf.mxu0
        %v2210 = vadd.f32 0.0, %v2209
        %2211 = vmatmul.bf16.gmra.mxu0 %v1062
        %v2212 = vpop.f32.mrf.mxu0
        %v2213 = vadd.f32 0.0, %v2212
        %v2214 = vpop.f32.mrf.mxu0
        %v2215 = vadd.f32 0.0, %v2214
        %2216 = vmatmul.bf16.gmra.mxu0 %v1065
        %v2217 = vpop.f32.mrf.mxu0
        %v2218 = vadd.f32 0.0, %v2217
        %v2219 = vpop.f32.mrf.mxu0
        %v2220 = vadd.f32 0.0, %v2219
        %2221 = vmatmul.bf16.gmra.mxu0 %v1708
        %v2222 = vpop.f32.mrf.mxu0
        %v2223 = vadd.f32 0.0, %v2222
        %v2224 = vpop.f32.mrf.mxu0
        %v2225 = vadd.f32 0.0, %v2224
        %2226 = vmatmul.bf16.gmra.mxu0 %v2138
        %v2227 = vpop.f32.mrf.mxu0
        %v2228 = vadd.f32 0.0, %v2227
        %v2229 = vpop.f32.mrf.mxu0
        %v2230 = vadd.f32 0.0, %v2229
        %2231 = vdwg.mxu0
        %v2232 = vadd.f32 %v2076, %v2153
        %v2233 = vadd.f32 %v2077, %v2155
        %v2234 = vadd.f32 %v2078, %v2158
        %v2235 = vadd.f32 %v2079, %v2160
        %v2236 = vadd.f32 %v2080, %v2163
        %v2237 = vadd.f32 %v2081, %v2165
        %v2238 = vadd.f32 %v2082, %v2168
        %v2239 = vadd.f32 %v2083, %v2170
        %v2240 = vadd.f32 %v2084, %v2173
        %v2241 = vadd.f32 %v2085, %v2175
        %v2242 = vadd.f32 %v2086, %v2178
        %v2243 = vadd.f32 %v2087, %v2180
        %v2244 = vadd.f32 %v2088, %v2183
        %v2245 = vadd.f32 %v2089, %v2185
        %v2246 = vadd.f32 %v2090, %v2188
        %v2247 = vadd.f32 %v2091, %v2190
        %v2248 = vadd.f32 %v2092, %v2193
        %v2249 = vadd.f32 %v2093, %v2195
        %v2250 = vadd.f32 %v2094, %v2198
        %v2251 = vadd.f32 %v2095, %v2200
        %v2252 = vadd.f32 %v2096, %v2203
        %v2253 = vadd.f32 %v2097, %v2205
        %v2254 = vadd.f32 %v2098, %v2208
        %v2255 = vadd.f32 %v2099, %v2210
        %v2256 = vadd.f32 %v2100, %v2213
        %v2257 = vadd.f32 %v2101, %v2215
        %v2258 = vadd.f32 %v2102, %v2218
        %v2259 = vadd.f32 %v2103, %v2220
        %v2260 = vadd.f32 %v2104, %v2223
        %v2261 = vadd.f32 %v2105, %v2225
        %v2262 = vadd.f32 %v2106, %v2228
        %v2263 = vadd.f32 %v2107, %v2230
        %v2265 = vrot.slane %v320, 5
        %v2266 = vrot.slane %v2265, 4
        %v2267 = vrot.slane %v321, 5
        %v2268 = vsel %vm1209, %v2266, %v2267
        %v2269 = vrot.slane %v2267, 4
        %v2270 = vrot.slane %v322, 5
        %v2271 = vsel %vm1209, %v2269, %v2270
        %s2272 = scalar_lea.vmem %s210, 16
        %v2273 = vld [vmem:[%s2272] sm:$0x3]
        %v2274 = vunpack.c.l.b16 %v2268
        %v2275 = vunpack.c.l.b16 %v2271
        %v2276 = vpack.c.b16 %v2275, %v2274
        %v2278 = vsel %vm408, %v2276, 0
        %v2281 = vsel %vm457, %v2273, 0
        %2283 = vmatpush.bf16.msra.mxu0 0
        %2284 = vmatpush.bf16.msra.mxu0 0
        %2285 = vmatpush.bf16.msra.mxu0 0
        %2286 = vmatpush.bf16.msra.mxu0 0
        %2287 = vmatpush.bf16.msra.mxu0 0
        %2288 = vmatpush.bf16.msra.mxu0 0
        %2289 = vmatpush.bf16.msra.mxu0 0
        %2290 = vmatpush.bf16.msra.mxu0 %v2281
        %2291 = vmatmul.bf16.gmra.mxu0 %v1379
        %v2292 = vpop.f32.mrf.mxu0
        %v2293 = vadd.f32 0.0, %v2292
        %v2294 = vpop.f32.mrf.mxu0
        %v2295 = vadd.f32 0.0, %v2294
        %2296 = vmatmul.bf16.gmra.mxu0 %v1382
        %v2297 = vpop.f32.mrf.mxu0
        %v2298 = vadd.f32 0.0, %v2297
        %v2299 = vpop.f32.mrf.mxu0
        %v2300 = vadd.f32 0.0, %v2299
        %2301 = vmatmul.bf16.gmra.mxu0 %v1385
        %v2302 = vpop.f32.mrf.mxu0
        %v2303 = vadd.f32 0.0, %v2302
        %v2304 = vpop.f32.mrf.mxu0
        %v2305 = vadd.f32 0.0, %v2304
        %2306 = vmatmul.bf16.gmra.mxu0 %v1388
        %v2307 = vpop.f32.mrf.mxu0
        %v2308 = vadd.f32 0.0, %v2307
        %v2309 = vpop.f32.mrf.mxu0
        %v2310 = vadd.f32 0.0, %v2309
        %2311 = vmatmul.bf16.gmra.mxu0 %v1391
        %v2312 = vpop.f32.mrf.mxu0
        %v2313 = vadd.f32 0.0, %v2312
        %v2314 = vpop.f32.mrf.mxu0
        %v2315 = vadd.f32 0.0, %v2314
        %2316 = vmatmul.bf16.gmra.mxu0 %v1394
        %v2317 = vpop.f32.mrf.mxu0
        %v2318 = vadd.f32 0.0, %v2317
        %v2319 = vpop.f32.mrf.mxu0
        %v2320 = vadd.f32 0.0, %v2319
        %2321 = vmatmul.bf16.gmra.mxu0 %v1397
        %v2322 = vpop.f32.mrf.mxu0
        %v2323 = vadd.f32 0.0, %v2322
        %v2324 = vpop.f32.mrf.mxu0
        %v2325 = vadd.f32 0.0, %v2324
        %2326 = vmatmul.bf16.gmra.mxu0 %v1400
        %v2327 = vpop.f32.mrf.mxu0
        %v2328 = vadd.f32 0.0, %v2327
        %v2329 = vpop.f32.mrf.mxu0
        %v2330 = vadd.f32 0.0, %v2329
        %2331 = vmatmul.bf16.gmra.mxu0 %v1403
        %v2332 = vpop.f32.mrf.mxu0
        %v2333 = vadd.f32 0.0, %v2332
        %v2334 = vpop.f32.mrf.mxu0
        %v2335 = vadd.f32 0.0, %v2334
        %2336 = vmatmul.bf16.gmra.mxu0 %v1406
        %v2337 = vpop.f32.mrf.mxu0
        %v2338 = vadd.f32 0.0, %v2337
        %v2339 = vpop.f32.mrf.mxu0
        %v2340 = vadd.f32 0.0, %v2339
        %2341 = vmatmul.bf16.gmra.mxu0 %v1409
        %v2342 = vpop.f32.mrf.mxu0
        %v2343 = vadd.f32 0.0, %v2342
        %v2344 = vpop.f32.mrf.mxu0
        %v2345 = vadd.f32 0.0, %v2344
        %2346 = vmatmul.bf16.gmra.mxu0 %v1412
        %v2347 = vpop.f32.mrf.mxu0
        %v2348 = vadd.f32 0.0, %v2347
        %v2349 = vpop.f32.mrf.mxu0
        %v2350 = vadd.f32 0.0, %v2349
        %2351 = vmatmul.bf16.gmra.mxu0 %v1415
        %v2352 = vpop.f32.mrf.mxu0
        %v2353 = vadd.f32 0.0, %v2352
        %v2354 = vpop.f32.mrf.mxu0
        %v2355 = vadd.f32 0.0, %v2354
        %2356 = vmatmul.bf16.gmra.mxu0 %v1418
        %v2357 = vpop.f32.mrf.mxu0
        %v2358 = vadd.f32 0.0, %v2357
        %v2359 = vpop.f32.mrf.mxu0
        %v2360 = vadd.f32 0.0, %v2359
        %2361 = vmatmul.bf16.gmra.mxu0 %v1848
        %v2362 = vpop.f32.mrf.mxu0
        %v2363 = vadd.f32 0.0, %v2362
        %v2364 = vpop.f32.mrf.mxu0
        %v2365 = vadd.f32 0.0, %v2364
        %2366 = vmatmul.bf16.gmra.mxu0 %v2278
        %v2367 = vpop.f32.mrf.mxu0
        %v2368 = vadd.f32 0.0, %v2367
        %v2369 = vpop.f32.mrf.mxu0
        %v2370 = vadd.f32 0.0, %v2369
        %2371 = vdwg.mxu0
        %v2372 = vadd.f32 %v2232, %v2293
        %v2373 = vadd.f32 %v2233, %v2295
        %v2374 = vadd.f32 %v2234, %v2298
        %v2375 = vadd.f32 %v2235, %v2300
        %v2376 = vadd.f32 %v2236, %v2303
        %v2377 = vadd.f32 %v2237, %v2305
        %v2378 = vadd.f32 %v2238, %v2308
        %v2379 = vadd.f32 %v2239, %v2310
        %v2380 = vadd.f32 %v2240, %v2313
        %v2381 = vadd.f32 %v2241, %v2315
        %v2382 = vadd.f32 %v2242, %v2318
        %v2383 = vadd.f32 %v2243, %v2320
        %v2384 = vadd.f32 %v2244, %v2323
        %v2385 = vadd.f32 %v2245, %v2325
        %v2386 = vadd.f32 %v2246, %v2328
        %v2387 = vadd.f32 %v2247, %v2330
        %v2388 = vadd.f32 %v2248, %v2333
        %v2389 = vadd.f32 %v2249, %v2335
        %v2390 = vadd.f32 %v2250, %v2338
        %v2391 = vadd.f32 %v2251, %v2340
        %v2392 = vadd.f32 %v2252, %v2343
        %v2393 = vadd.f32 %v2253, %v2345
        %v2394 = vadd.f32 %v2254, %v2348
        %v2395 = vadd.f32 %v2255, %v2350
        %v2396 = vadd.f32 %v2256, %v2353
        %v2397 = vadd.f32 %v2257, %v2355
        %v2398 = vadd.f32 %v2258, %v2358
        %v2399 = vadd.f32 %v2259, %v2360
        %v2400 = vadd.f32 %v2260, %v2363
        %v2401 = vadd.f32 %v2261, %v2365
        %v2402 = vadd.f32 %v2262, %v2368
        %v2403 = vadd.f32 %v2263, %v2370
        %v2404 = vmax.f32 %v2372, 0.0
        %v2405 = vmax.f32 %v2373, 0.0
        %v2406 = vmax.f32 %v2374, 0.0
        %v2407 = vmax.f32 %v2375, 0.0
        %v2408 = vmax.f32 %v2376, 0.0
        %v2409 = vmax.f32 %v2377, 0.0
        %v2410 = vmax.f32 %v2378, 0.0
        %v2411 = vmax.f32 %v2379, 0.0
        %v2412 = vmax.f32 %v2380, 0.0
        %v2413 = vmax.f32 %v2381, 0.0
        %v2414 = vmax.f32 %v2382, 0.0
        %v2415 = vmax.f32 %v2383, 0.0
        %v2416 = vmax.f32 %v2384, 0.0
        %v2417 = vmax.f32 %v2385, 0.0
        %v2418 = vmax.f32 %v2386, 0.0
        %v2419 = vmax.f32 %v2387, 0.0
        %v2420 = vmax.f32 %v2388, 0.0
        %v2421 = vmax.f32 %v2389, 0.0
        %v2422 = vmax.f32 %v2390, 0.0
        %v2423 = vmax.f32 %v2391, 0.0
        %v2424 = vmax.f32 %v2392, 0.0
        %v2425 = vmax.f32 %v2393, 0.0
        %v2426 = vmax.f32 %v2394, 0.0
        %v2427 = vmax.f32 %v2395, 0.0
        %v2428 = vmax.f32 %v2396, 0.0
        %v2429 = vmax.f32 %v2397, 0.0
        %v2430 = vmax.f32 %v2398, 0.0
        %v2431 = vmax.f32 %v2399, 0.0
        %v2432 = vmax.f32 %v2400, 0.0
        %v2433 = vmax.f32 %v2401, 0.0
        %v2434 = vmax.f32 %v2402, 0.0
        %v2435 = vmax.f32 %v2403, 0.0
        %vm2436 = vcmask 261120
        %2437 = vst.msk [vmem:[%s201] sm:$0xff] %vm2436, %v2404
        %2438 = vst.msk [vmem:[%s201 + $0x8] sm:$0xff] %vm2436, %v2405
        %2439 = vst.msk [vmem:[%s201 + $0x10] sm:$0xff] %vm2436, %v2406
        %2440 = vst.msk [vmem:[%s201 + $0x18] sm:$0xff] %vm2436, %v2407
        %2441 = vst.msk [vmem:[%s201 + $0x20] sm:$0xff] %vm2436, %v2408
        %2442 = vst.msk [vmem:[%s201 + $0x28] sm:$0xff] %vm2436, %v2409
        %2443 = vst.msk [vmem:[%s201 + $0x30] sm:$0xff] %vm2436, %v2410
        %2444 = vst.msk [vmem:[%s201 + $0x38] sm:$0xff] %vm2436, %v2411
        %2445 = vst.msk [vmem:[%s201 + $0x40] sm:$0xff] %vm2436, %v2412
        %2446 = vst.msk [vmem:[%s201 + $0x48] sm:$0xff] %vm2436, %v2413
        %2447 = vst.msk [vmem:[%s201 + $0x50] sm:$0xff] %vm2436, %v2414
        %2448 = vst.msk [vmem:[%s201 + $0x58] sm:$0xff] %vm2436, %v2415
        %2449 = vst.msk [vmem:[%s201 + $0x60] sm:$0xff] %vm2436, %v2416
        %2450 = vst.msk [vmem:[%s201 + $0x68] sm:$0xff] %vm2436, %v2417
        %2451 = vst.msk [vmem:[%s201 + $0x70] sm:$0xff] %vm2436, %v2418
        %2452 = vst.msk [vmem:[%s201 + $0x78] sm:$0xff] %vm2436, %v2419
        %2453 = vst.msk [vmem:[%s201 + $0x80] sm:$0xff] %vm2436, %v2420
        %2454 = vst.msk [vmem:[%s201 + $0x88] sm:$0xff] %vm2436, %v2421
        %2455 = vst.msk [vmem:[%s201 + $0x90] sm:$0xff] %vm2436, %v2422
        %2456 = vst.msk [vmem:[%s201 + $0x98] sm:$0xff] %vm2436, %v2423
        %2457 = vst.msk [vmem:[%s201 + $0xa0] sm:$0xff] %vm2436, %v2424
        %2458 = vst.msk [vmem:[%s201 + $0xa8] sm:$0xff] %vm2436, %v2425
        %2459 = vst.msk [vmem:[%s201 + $0xb0] sm:$0xff] %vm2436, %v2426
        %2460 = vst.msk [vmem:[%s201 + $0xb8] sm:$0xff] %vm2436, %v2427
        %2461 = vst.msk [vmem:[%s201 + $0xc0] sm:$0xff] %vm2436, %v2428
        %2462 = vst.msk [vmem:[%s201 + $0xc8] sm:$0xff] %vm2436, %v2429
        %2463 = vst.msk [vmem:[%s201 + $0xd0] sm:$0xff] %vm2436, %v2430
        %2464 = vst.msk [vmem:[%s201 + $0xd8] sm:$0xff] %vm2436, %v2431
        %2465 = vst.msk [vmem:[%s201 + $0xe0] sm:$0xff] %vm2436, %v2432
        %2466 = vst.msk [vmem:[%s201 + $0xe8] sm:$0xff] %vm2436, %v2433
        %2467 = vst.msk [vmem:[%s201 + $0xf0] sm:$0xff] %vm2436, %v2434
        %2468 = vst.msk [vmem:[%s201 + $0xf8] sm:$0xff] %vm2436, %v2435
        %s2469 = sand.u32 %s117, 1
        %s2470 = scalar_lea.sflag [#allocation3], %s2469
        %s2471 = sand.u32 %s117, 1
        %s2472 = smul.addr %s2471, 256
        %s2473 = scalar_lea.vmem [#allocation2], %s2472
        // Predicated region
        $region33: #{tpu_custom_call.1} parent=31 // pred_check
          %p2474 = pneg %p127
        $region34: #{tpu_custom_call.1} parent=31 // pred_check_branch
          %2476 = sbr.rel (%p2474) target = $region36
        $region35: #{tpu_custom_call.1} parent=31 // pred_region
          %2478 = vsyncadd %s2470, 0
          %s2479 = smul.addr %s21, 32
          %s2480 = sadd.s32 %s22, %s2479
          %s2481 = smul.addr %s2480, 8
          %s2482 = scalar_lea.hbm %s3, %s2481
          %s2483 = sshll.u32 %s2473, 4
          %s2484 = int_to_ptr.vmem [resolvable:$true] %s2483
          %s2485 = sshll.u32 %s2482, 4
          %s2486 = int_to_ptr.hbm [resolvable:$true] %s2485
          %2491 = dma.vmem_to_hbm [thread:$0]  %s2484, 4096, %s2486, %s2470, 128, 128, 8
        $region36: #{tpu_custom_call.1} parent=31 // pred_fallthru
          _
      $region32: #{tpu_custom_call.1} parent=5 // pred_fallthru
        _
      %p2492 = scmp.le.s32.totalorder 2, %s12
      // Predicated region
      $region37: #{tpu_custom_call.1} parent=5 // pred_check
        %p2493 = pneg %p2492
      $region38: #{tpu_custom_call.1} parent=5 // pred_check_branch
        %2495 = sbr.rel (%p2493) target = $region40
      $region39: #{tpu_custom_call.1} parent=5 // pred_region
        %s2496 = ssub.s32 %s12, 2
        // Predicated region
        $region41: #{tpu_custom_call.1} parent=39 // pred_check
          %p2497 = pneg %p133
        $region42: #{tpu_custom_call.1} parent=39 // pred_check_branch
          %2499 = sbr.rel (%p2497) target = $region44
        $region43: #{tpu_custom_call.1} parent=39 // pred_region
          %s2500 = sand.u32 %s118, 1
          %s2501 = scalar_lea.sflag [#allocation3], %s2500
          %s2502 = sand.u32 %s118, 1
          %s2503 = smul.addr %s2502, 256
          %s2504 = scalar_lea.vmem [#allocation2], %s2503
          %2506 = dma.done %s2501, 4096
        $region44: #{tpu_custom_call.1} parent=39 // pred_fallthru
          _
      $region40: #{tpu_custom_call.1} parent=5 // pred_fallthru
        _
    $region6: #{tpu_custom_call.1} parent=1 // loop_footer
      %s16 = sadd.s32 1, %s12
    $region7: #{tpu_custom_call.1} parent=1 // loop_footer_branch
      %11 = sbr.rel target = $region3
    $region8: #{tpu_custom_call.1} parent=1 // loop_exit
      _
    %2507 = vsyncpa [#allocation3], 1
    %s2508 = scalar_lea.sflag [#allocation3], 1
    %2509 = vsyncpa %s2508, 1

</llo_original>
